<compile_context>
chip_gen: v7x
topology: tpu7x:2x2x1
jax: 0.10.0
libtpu: 0.0.40
codegen_flags: <defaults>
</compile_context>

<pallas_src>
import functools
import math

import jax
import jax.numpy as jnp
import numpy as np
from jax import lax
from jax.experimental import pallas as pl
from jax.experimental.pallas import tpu as pltpu


def _sigmoid(z):
    # Exact (to f32 rounding) sigmoid via tanh: runs on the EUP, no f32 divide.
    return 0.5 * jnp.tanh(0.5 * z) + 0.5


def _apdl_lstm_kernel(xp_ref, whh_ref, h_out_ref, c_out_ref, aph_ref, apc_ref,
                      hist_h_ref, hist_c_ref, *, hidden_pad, delay_far,
                      ap_coeff, chunk, total_steps, unroll, has_tail,
                      hist_in_regs, mxu_dtype):
    # xp_ref:     (Tc, Bb, 4*Hp)   precomputed x @ W_ih^T + bias (time-major chunk)
    # whh_ref:    (Hp, 4*Hp)       recurrent weights (pre-transposed, padded)
    # h_out_ref:  (Tc, Bb, Hp)     hidden-state history chunk (output)
    # c_out_ref:  (Tc, Bb, Hp)     cell-state history chunk (output)
    # aph/apc:    (Bb, Hp) f32     allpass state halves (output accumulators)
    # hist_*_ref: (DF, Bb, Hp) f32 ring buffer of the last delay_far states
    Hp = hidden_pad
    DF = delay_far
    t = pl.program_id(1)

    @pl.when(t == 0)
    def _():
        # Only the small carries are zeroed; output chunks are fully written.
        aph_ref[...] = jnp.zeros_like(aph_ref)
        apc_ref[...] = jnp.zeros_like(apc_ref)
        hist_h_ref[...] = jnp.zeros_like(hist_h_ref)
        hist_c_ref[...] = jnp.zeros_like(hist_c_ref)

    whh = whh_ref[...]               # hoisted out of the time loop
    i0 = t * chunk

    def step(i, j, u, ap_h, ap_c, hist_h, hist_c):
        # i: global step (traced); j: chunk-local step (traced);
        # u: position inside the unroll group (static).  chunk % unroll == 0 and
        # unroll % DF == 0, so i % DF == u % DF  ->  slots are compile-time.
        slot_w = u % DF              # holds state[i - delay_far]; overwritten with state[i]
        slot_n = (u + 1) % DF        # holds state[i - delay_near]
        if hist_in_regs:
            h_near, h_far = hist_h[slot_n], hist_h[slot_w]
            c_near, c_far = hist_c[slot_n], hist_c[slot_w]
        else:
            h_near, h_far = hist_h_ref[slot_n], hist_h_ref[slot_w]
            c_near, c_far = hist_c_ref[slot_n], hist_c_ref[slot_w]

        ap_h_new = ap_coeff * (h_near - ap_h) + h_far
        ap_c_new = ap_coeff * (c_near - ap_c) + c_far

        # Input projection was hoisted outside the kernel; only the recurrent
        # dot remains per step (optionally bf16 MXU inputs, f32 accumulation).
        lhs = ap_h_new if mxu_dtype is None else ap_h_new.astype(mxu_dtype)
        gates = xp_ref[j] + jnp.dot(lhs, whh, preferred_element_type=jnp.float32)

        i_g = _sigmoid(gates[:, 0 * Hp:1 * Hp])   # lane-aligned gate slices
        f_g = _sigmoid(gates[:, 1 * Hp:2 * Hp])
        g_g = jnp.tanh(gates[:, 2 * Hp:3 * Hp])
        o_g = _sigmoid(gates[:, 3 * Hp:4 * Hp])

        c_new = f_g * ap_c_new + i_g * g_g
        h_new = o_g * jnp.tanh(c_new)

        h_out_ref[j] = h_new.astype(h_out_ref.dtype)
        c_out_ref[j] = c_new.astype(c_out_ref.dtype)

        if hist_in_regs:
            hist_h = tuple(h_new if k == slot_w else hist_h[k] for k in range(DF))
            hist_c = tuple(c_new if k == slot_w else hist_c[k] for k in range(DF))
        else:
            hist_h_ref[slot_w] = h_new
            hist_c_ref[slot_w] = c_new

        if has_tail:
            # Padded tail steps (only the final chunk) must not advance the
            # returned allpass state; cheap vselect, no predicated stores.
            valid = i < total_steps
            ap_h_new = jnp.where(valid, ap_h_new, ap_h)
            ap_c_new = jnp.where(valid, ap_c_new, ap_c)
        return ap_h_new, ap_c_new, hist_h, hist_c

    def outer(o, carry):
        ap_h, ap_c, hist_h, hist_c = carry
        jbase = o * unroll
        for u in range(unroll):      # manual static unroll of the body
            ap_h, ap_c, hist_h, hist_c = step(i0 + jbase + u, jbase + u, u,
                                              ap_h, ap_c, hist_h, hist_c)
        return ap_h, ap_c, hist_h, hist_c

    if hist_in_regs:
        hist_h0 = tuple(hist_h_ref[k] for k in range(DF))
        hist_c0 = tuple(hist_c_ref[k] for k in range(DF))
    else:
        hist_h0, hist_c0 = (), ()

    carry0 = (aph_ref[...], apc_ref[...], hist_h0, hist_c0)
    ap_h, ap_c, hist_h, hist_c = lax.fori_loop(0, chunk // unroll, outer, carry0)

    # Spill carries back once per chunk (not per step).
    aph_ref[...] = ap_h
    apc_ref[...] = ap_c
    if hist_in_regs:
        for k in range(DF):
            hist_h_ref[k] = hist_h[k]
            hist_c_ref[k] = hist_c[k]


def _tensorcores_per_chip() -> int:
    """Best-effort TensorCore count per chip (megacore detection)."""
    try:
        kind = jax.devices()[0].device_kind.lower()
    except Exception:
        return 1
    if any(s in kind for s in ("v4", "v5p", "v7")):
        return 2
    return 1


def apdl_rnn_forward(x, weight_ih, weight_hh, bias_ih, bias_hh, os_factor=1.0,
                     time_chunk=64, unroll=4, mxu_bf16=True, batch_blocks=None):
    """Pallas implementation of APDL_RNN.forward (LSTMCell cell, h=None path).

    Returns (h_states, (h_states, c_states, ap_state)) matching the torch module:
      h_states, c_states: (B, T, H);  ap_state: (B, 2*H) final allpass state.
    """
    if os_factor < 1.0:
        raise NotImplementedError("os_factor < 1 (delay_near == 0) not supported")
    B, T, _ = x.shape
    H = weight_ih.shape[0] // 4

    delay_near = math.floor(os_factor)
    delay_far = delay_near + 1
    alpha = float(os_factor) - delay_near
    ap_coeff = (1.0 - alpha) / (1.0 + alpha)

    f32 = jnp.float32
    Hp = ((H + 127) // 128) * 128          # 128-aligned hidden size (gate stride)
    G = 4 * Hp

    # Pad weights/bias so every gate block starts at a 128-aligned lane offset.
    wih = jnp.pad(weight_ih.astype(f32).reshape(4, H, -1),
                  ((0, 0), (0, Hp - H), (0, 0))).reshape(G, -1)          # (G, In)
    whh_m = jnp.pad(weight_hh.astype(f32).reshape(4, H, H),
                    ((0, 0), (0, Hp - H), (0, Hp - H))).reshape(G, Hp)   # (G, Hp)
    whh_t = whh_m.T                                                      # (Hp, G)
    if mxu_bf16:
        whh_t = whh_t.astype(jnp.bfloat16)
    bias = jnp.pad((bias_ih + bias_hh).astype(f32).reshape(4, H),
                   ((0, 0), (0, Hp - H))).reshape(G)                     # (G,)

    # Hoisted input projection: one big matmul, time-major output (batch-first
    # -> time-major transpose folded into the einsum).  HIGHEST only on the
    # exact-f32 path; DEFAULT is plenty when the recurrent dot is bf16 anyway.
    proj_prec = lax.Precision.DEFAULT if mxu_bf16 else lax.Precision.HIGHEST
    xp = jnp.einsum("bti,gi->tbg", x.astype(f32), wih,
                    precision=proj_prec) + bias                          # (T, B, G)

    # --- batch padding (full sublanes) + per-generation batch blocking -------
    B_pad = ((B + 7) // 8) * 8
    if B_pad != B:
        xp = jnp.pad(xp, ((0, 0), (0, B_pad - B), (0, 0)))
    if batch_blocks is None:
        cores = _tensorcores_per_chip()
        B_blk = B_pad                       # single TC: one sweep over the whole batch
        if cores > 1:
            half = B_pad // cores           # megacore: one block per TensorCore
            if half >= 8 and half % 8 == 0 and half * cores == B_pad:
                B_blk = half
        while B_blk > 256 and B_blk % 16 == 0:   # cap block size (vregs / VMEM)
            B_blk //= 2
    else:
        assert B_pad % batch_blocks == 0 and (B_pad // batch_blocks) % 8 == 0
        B_blk = B_pad // batch_blocks
    nb = B_pad // B_blk

    # --- time chunking: unroll % delay_far == 0 makes ring slots static ------
    unroll = math.lcm(max(1, int(unroll)), delay_far)
    Tc = max(unroll, min(int(time_chunk), ((T + unroll - 1) // unroll) * unroll))
    Tc = ((Tc + unroll - 1) // unroll) * unroll
    per_t_bytes = B_blk * (G + 2 * Hp) * 4 * 2      # xp + 2 outputs, double-buffered
    budget = 16 << 20                               # leave VMEM headroom (v7x: 64 MiB total)
    if Tc * per_t_bytes > budget:
        Tc = max(unroll, (budget // per_t_bytes) // unroll * unroll)
    T_pad = ((T + Tc - 1) // Tc) * Tc
    nt = T_pad // Tc
    has_tail = (T_pad != T)
    if has_tail:
        xp = jnp.pad(xp, ((0, T_pad - T), (0, 0), (0, 0)))

    # Carry the history ring in vregs only while register pressure stays low.
    hist_in_regs = (2 + 2 * delay_far) * (B_blk // 8) <= 16

    kernel = functools.partial(
        _apdl_lstm_kernel, hidden_pad=Hp, delay_far=delay_far, ap_coeff=ap_coeff,
        chunk=Tc, total_steps=T, unroll=unroll, has_tail=has_tail,
        hist_in_regs=hist_in_regs,
        mxu_dtype=jnp.bfloat16 if mxu_bf16 else None)

    out_shape = (
        jax.ShapeDtypeStruct((T_pad, B_pad, Hp), x.dtype),   # h history (time-major)
        jax.ShapeDtypeStruct((T_pad, B_pad, Hp), x.dtype),   # c history (time-major)
        jax.ShapeDtypeStruct((B_pad, Hp), f32),              # final allpass state (h half)
        jax.ShapeDtypeStruct((B_pad, Hp), f32),              # final allpass state (c half)
    )

    grid_spec = pltpu.PrefetchScalarGridSpec(
        num_scalar_prefetch=0,
        grid=(nb, nt),
        in_specs=[
            pl.BlockSpec((Tc, B_blk, G), lambda b, t: (t, b, 0)),
            pl.BlockSpec((Hp, G), lambda b, t: (0, 0)),
        ],
        out_specs=(
            pl.BlockSpec((Tc, B_blk, Hp), lambda b, t: (t, b, 0)),
            pl.BlockSpec((Tc, B_blk, Hp), lambda b, t: (t, b, 0)),
            pl.BlockSpec((B_blk, Hp), lambda b, t: (b, 0)),
            pl.BlockSpec((B_blk, Hp), lambda b, t: (b, 0)),
        ),
        scratch_shapes=[
            pltpu.VMEM((delay_far, B_blk, Hp), f32),   # h-state ring buffer
            pltpu.VMEM((delay_far, B_blk, Hp), f32),   # c-state ring buffer
        ],
    )

    h_tm, c_tm, ap_h, ap_c = pl.pallas_call(
        kernel,
        grid_spec=grid_spec,
        out_shape=out_shape,
        compiler_params=pltpu.CompilerParams(
            dimension_semantics=("parallel", "arbitrary"),
            vmem_limit_bytes=32 * 1024 * 1024),
    )(xp, whh_t)

    # TODO(synk): this batch-first transpose is one extra HBM pass over both
    #             outputs; fold it into the kernel (per-chunk transpose) if it
    #             shows in profiles.
    h_states = jnp.transpose(h_tm[:T, :B, :H], (1, 0, 2))   # (B, T, H)
    c_states = jnp.transpose(c_tm[:T, :B, :H], (1, 0, 2))   # (B, T, H)
    ap_state = jnp.concatenate([ap_h[:B, :H], ap_c[:B, :H]],
                               axis=-1).astype(x.dtype)     # (B, 2H)
    return h_states, (h_states, c_states, ap_state)


def _reference_forward(x, wih, whh, bih, bhh, os_factor):
    """Pure numpy mirror of the torch APDL_RNN forward (LSTMCell, h=None)."""
    B, T, _ = x.shape
    H = wih.shape[0] // 4
    dn = math.floor(os_factor)
    df = dn + 1
    alpha = os_factor - dn
    c_ap = (1.0 - alpha) / (1.0 + alpha)
    states = np.zeros((B, T, 2 * H), dtype=np.float32)
    ap = np.zeros((B, 2 * H), dtype=np.float32)

    def sig(z):
        return 1.0 / (1.0 + np.exp(-z))

    for i in range(T):
        ap = c_ap * (states[:, i - dn, :] - ap) + states[:, i - df, :]
        h_prev, c_prev = ap[:, :H], ap[:, H:]
        xi = x[:, i, :]
        gates = xi @ wih.T + bih + h_prev @ whh.T + bhh
        i_g = sig(gates[:, :H])
        f_g = sig(gates[:, H:2 * H])
        g_g = np.tanh(gates[:, 2 * H:3 * H])
        o_g = sig(gates[:, 3 * H:])
        c_new = f_g * c_prev + i_g * g_g
        h_new = o_g * np.tanh(c_new)
        states[:, i, :H] = h_new
        states[:, i, H:] = c_new
    return states, ap


if __name__ == "__main__":
    B, T, IN, H = 2, 22, 4, 32
    OS_FACTOR = 1.5   # delay_near=1, delay_far=2, allpass_coeff = 1/3

    key = jax.random.PRNGKey(0)
    k1, k2, k3, k4, k5 = jax.random.split(key, 5)
    scale = 1.0 / math.sqrt(H)   # PyTorch RNNCellBase uniform init range
    weight_ih = jax.random.uniform(k1, (4 * H, IN), jnp.float32, -scale, scale)
    weight_hh = jax.random.uniform(k2, (4 * H, H), jnp.float32, -scale, scale)
    bias_ih = jax.random.uniform(k3, (4 * H,), jnp.float32, -scale, scale)
    bias_hh = jax.random.uniform(k4, (4 * H,), jnp.float32, -scale, scale)
    x = jax.random.normal(k5, (B, T, IN), jnp.float32)

    ref_states, ref_ap = _reference_forward(
        np.asarray(x), np.asarray(weight_ih), np.asarray(weight_hh),
        np.asarray(bias_ih), np.asarray(bias_hh), OS_FACTOR)

    # Exact-f32 path: bit-comparable with the torch/numpy reference.
    h_all, (h_s, c_s, ap_state) = apdl_rnn_forward(
        x, weight_ih, weight_hh, bias_ih, bias_hh, os_factor=OS_FACTOR,
        mxu_bf16=False)
    jax.block_until_ready(h_all)
    np.testing.assert_allclose(np.asarray(h_all), ref_states[..., :H],
                               rtol=2e-4, atol=2e-4)
    np.testing.assert_allclose(np.asarray(c_s), ref_states[..., H:],
                               rtol=2e-4, atol=2e-4)
    np.testing.assert_allclose(np.asarray(ap_state), ref_ap,
                               rtol=2e-4, atol=2e-4)

    # Fast path: bf16 MXU inputs on the recurrent dot (f32 accumulation).
    h_fast, (_, c_fast, ap_fast) = apdl_rnn_forward(
        x, weight_ih, weight_hh, bias_ih, bias_hh, os_factor=OS_FACTOR,
        mxu_bf16=True)
    jax.block_until_ready(h_fast)
    np.testing.assert_allclose(np.asarray(h_fast), ref_states[..., :H],
                               rtol=1e-2, atol=1e-2)
    np.testing.assert_allclose(np.asarray(c_fast), ref_states[..., H:],
                               rtol=1e-2, atol=1e-2)
    np.testing.assert_allclose(np.asarray(ap_fast), ref_ap,
                               rtol=1e-2, atol=1e-2)

    print("KERNEL_OK")
</pallas_src>

<mosaic_0001>
module attributes {stable_mosaic.version = 11 : i64} {
  func.func @_apdl_lstm_kernel(%arg0: i32, %arg1: i32, %arg2: memref<24x8x512xf32, #tpu.memory_space<vmem>>, %arg3: memref<128x512xf32, #tpu.memory_space<vmem>>, %arg4: memref<24x8x128xf32, #tpu.memory_space<vmem>>, %arg5: memref<24x8x128xf32, #tpu.memory_space<vmem>>, %arg6: memref<8x128xf32, #tpu.memory_space<vmem>>, %arg7: memref<8x128xf32, #tpu.memory_space<vmem>>, %arg8: memref<2x8x128xf32, #tpu.memory_space<vmem>>, %arg9: memref<2x8x128xf32, #tpu.memory_space<vmem>>) attributes {dimension_semantics = [#tpu.dimension_semantics<parallel>, #tpu.dimension_semantics<arbitrary>], iteration_bounds = array<i64: 1, 1>, scalar_prefetch = 0 : i64, scratch_operands = 2 : i64, tpu.core_type = #tpu.core_type<tc>, window_params = [{transform_indices = @transform_0, window_bounds = array<i64: 24, 8, 512>}, {pipeline_mode = #tpu.pipeline_mode<synchronous>, transform_indices = @transform_1, window_bounds = array<i64: 128, 512>}, {transform_indices = @transform_2, window_bounds = array<i64: 24, 8, 128>}, {transform_indices = @transform_3, window_bounds = array<i64: 24, 8, 128>}, {transform_indices = @transform_4, window_bounds = array<i64: 8, 128>}, {transform_indices = @transform_5, window_bounds = array<i64: 8, 128>}]} {
    %c0_i32 = arith.constant 0 : i32
    %0 = arith.cmpi eq, %arg1, %c0_i32 : i32
    %1 = arith.extui %0 : i1 to i32
    %c0_i32_0 = arith.constant 0 : i32
    %2 = arith.cmpi ne, %1, %c0_i32_0 : i32
    scf.if %2 {
      %cst = arith.constant 0.000000e+00 : f32
      %31 = vector.broadcast %cst : f32 to vector<8x128xf32>
      %c0_35 = arith.constant 0 : index
      %c0_36 = arith.constant 0 : index
      %32 = vector.load %arg6[%c0_35, %c0_36] : memref<8x128xf32, #tpu.memory_space<vmem>>, vector<8x128xf32>
      tpu.vector_store %arg6[%c0_35, %c0_36], %31 {strides = array<i32>} : memref<8x128xf32, #tpu.memory_space<vmem>>, vector<8x128xf32>,
      %cst_37 = arith.constant 0.000000e+00 : f32
      %33 = vector.broadcast %cst_37 : f32 to vector<8x128xf32>
      %c0_38 = arith.constant 0 : index
      %c0_39 = arith.constant 0 : index
      %34 = vector.load %arg7[%c0_38, %c0_39] : memref<8x128xf32, #tpu.memory_space<vmem>>, vector<8x128xf32>
      tpu.vector_store %arg7[%c0_38, %c0_39], %33 {strides = array<i32>} : memref<8x128xf32, #tpu.memory_space<vmem>>, vector<8x128xf32>,
      %cst_40 = arith.constant 0.000000e+00 : f32
      %35 = vector.broadcast %cst_40 : f32 to vector<2x8x128xf32>
      %c0_41 = arith.constant 0 : index
      %c0_42 = arith.constant 0 : index
      %c0_43 = arith.constant 0 : index
      %36 = vector.load %arg8[%c0_41, %c0_42, %c0_43] : memref<2x8x128xf32, #tpu.memory_space<vmem>>, vector<2x8x128xf32>
      tpu.vector_store %arg8[%c0_41, %c0_42, %c0_43], %35 {strides = array<i32>} : memref<2x8x128xf32, #tpu.memory_space<vmem>>, vector<2x8x128xf32>,
      %cst_44 = arith.constant 0.000000e+00 : f32
      %37 = vector.broadcast %cst_44 : f32 to vector<2x8x128xf32>
      %c0_45 = arith.constant 0 : index
      %c0_46 = arith.constant 0 : index
      %c0_47 = arith.constant 0 : index
      %38 = vector.load %arg9[%c0_45, %c0_46, %c0_47] : memref<2x8x128xf32, #tpu.memory_space<vmem>>, vector<2x8x128xf32>
      tpu.vector_store %arg9[%c0_45, %c0_46, %c0_47], %37 {strides = array<i32>} : memref<2x8x128xf32, #tpu.memory_space<vmem>>, vector<2x8x128xf32>,
    } else {
    }
    %c0 = arith.constant 0 : index
    %c0_1 = arith.constant 0 : index
    %3 = vector.load %arg3[%c0, %c0_1] : memref<128x512xf32, #tpu.memory_space<vmem>>, vector<128x512xf32>
    %c24_i32 = arith.constant 24 : i32
    %4 = arith.muli %arg1, %c24_i32 : i32
    %c0_2 = arith.constant 0 : index
    %c0_3 = arith.constant 0 : index
    %c0_4 = arith.constant 0 : index
    %5 = vector.load %arg8[%c0_2, %c0_3, %c0_4] : memref<2x8x128xf32, #tpu.memory_space<vmem>>, vector<1x8x128xf32>
    %6 = vector.shape_cast %5 : vector<1x8x128xf32> to vector<8x128xf32>
    %c1 = arith.constant 1 : index
    %c0_5 = arith.constant 0 : index
    %c0_6 = arith.constant 0 : index
    %7 = vector.load %arg8[%c1, %c0_5, %c0_6] : memref<2x8x128xf32, #tpu.memory_space<vmem>>, vector<1x8x128xf32>
    %8 = vector.shape_cast %7 : vector<1x8x128xf32> to vector<8x128xf32>
    %c0_7 = arith.constant 0 : index
    %c0_8 = arith.constant 0 : index
    %c0_9 = arith.constant 0 : index
    %9 = vector.load %arg9[%c0_7, %c0_8, %c0_9] : memref<2x8x128xf32, #tpu.memory_space<vmem>>, vector<1x8x128xf32>
    %10 = vector.shape_cast %9 : vector<1x8x128xf32> to vector<8x128xf32>
    %c1_10 = arith.constant 1 : index
    %c0_11 = arith.constant 0 : index
    %c0_12 = arith.constant 0 : index
    %11 = vector.load %arg9[%c1_10, %c0_11, %c0_12] : memref<2x8x128xf32, #tpu.memory_space<vmem>>, vector<1x8x128xf32>
    %12 = vector.shape_cast %11 : vector<1x8x128xf32> to vector<8x128xf32>
    %c0_13 = arith.constant 0 : index
    %c0_14 = arith.constant 0 : index
    %13 = vector.load %arg6[%c0_13, %c0_14] : memref<8x128xf32, #tpu.memory_space<vmem>>, vector<8x128xf32>
    %c0_15 = arith.constant 0 : index
    %c0_16 = arith.constant 0 : index
    %14 = vector.load %arg7[%c0_15, %c0_16] : memref<8x128xf32, #tpu.memory_space<vmem>>, vector<8x128xf32>
    %c0_i32_17 = arith.constant 0 : i32
    %c6_i32 = arith.constant 6 : i32
    %15 = arith.addi %c0_i32_17, %c6_i32 : i32
    %c1_i32 = arith.constant 1 : i32
    %16:6 = scf.for %arg10 = %c0_i32_17 to %15 step %c1_i32 iter_args(%arg11 = %13, %arg12 = %14, %arg13 = %6, %arg14 = %8, %arg15 = %10, %arg16 = %12) -> (vector<8x128xf32>, vector<8x128xf32>, vector<8x128xf32>, vector<8x128xf32>, vector<8x128xf32>, vector<8x128xf32>)  : i32 {
      %c4_i32 = arith.constant 4 : i32
      %31 = arith.muli %arg10, %c4_i32 : i32
      %32 = arith.addi %4, %31 : i32
      %c0_i32_35 = arith.constant 0 : i32
      %33 = arith.addi %32, %c0_i32_35 : i32
      %c0_i32_36 = arith.constant 0 : i32
      %34 = arith.addi %31, %c0_i32_36 : i32
      %35 = arith.subf %arg14, %arg11 : vector<8x128xf32>
      %cst = arith.constant 0.333333343 : f32
      %36 = vector.broadcast %cst : f32 to vector<8x128xf32>
      %37 = arith.mulf %36, %35 : vector<8x128xf32>
      %38 = arith.addf %37, %arg13 : vector<8x128xf32>
      %39 = arith.subf %arg16, %arg12 : vector<8x128xf32>
      %cst_37 = arith.constant 0.333333343 : f32
      %40 = vector.broadcast %cst_37 : f32 to vector<8x128xf32>
      %41 = arith.mulf %40, %39 : vector<8x128xf32>
      %42 = arith.addf %41, %arg15 : vector<8x128xf32>
      %43 = arith.index_cast %34 : i32 to index
      %c0_38 = arith.constant 0 : index
      %c0_39 = arith.constant 0 : index
      %44 = vector.load %arg2[%43, %c0_38, %c0_39] : memref<24x8x512xf32, #tpu.memory_space<vmem>>, vector<1x8x512xf32>
      %45 = vector.shape_cast %44 : vector<1x8x512xf32> to vector<8x512xf32>
      %cst_40 = arith.constant dense<0.000000e+00> : vector<8x512xf32>
      %46 = tpu.matmul %38, %3, %cst_40 {dimension_numbers = #tpu.dot_dimension_numbers<[1], [0], [0], [1], [0, 0, 1, 1], [], []>} : vector<8x128xf32>, vector<128x512xf32>, vector<8x512xf32> -> vector<8x512xf32>
      %47 = arith.addf %45, %46 : vector<8x512xf32>
      %48 = vector.extract_strided_slice %47 {offsets = [0, 0], sizes = [8, 128], strides = [1, 1]} : vector<8x512xf32> to vector<8x128xf32>
      %cst_41 = arith.constant 5.000000e-01 : f32
      %49 = vector.broadcast %cst_41 : f32 to vector<8x128xf32>
      %50 = arith.mulf %49, %48 : vector<8x128xf32>
      %51 = math.tanh %50 : vector<8x128xf32>
      %cst_42 = arith.constant 5.000000e-01 : f32
      %52 = vector.broadcast %cst_42 : f32 to vector<8x128xf32>
      %53 = arith.mulf %52, %51 : vector<8x128xf32>
      %cst_43 = arith.constant 5.000000e-01 : f32
      %54 = vector.broadcast %cst_43 : f32 to vector<8x128xf32>
      %55 = arith.addf %53, %54 : vector<8x128xf32>
      %56 = vector.extract_strided_slice %47 {offsets = [0, 128], sizes = [8, 128], strides = [1, 1]} : vector<8x512xf32> to vector<8x128xf32>
      %cst_44 = arith.constant 5.000000e-01 : f32
      %57 = vector.broadcast %cst_44 : f32 to vector<8x128xf32>
      %58 = arith.mulf %57, %56 : vector<8x128xf32>
      %59 = math.tanh %58 : vector<8x128xf32>
      %cst_45 = arith.constant 5.000000e-01 : f32
      %60 = vector.broadcast %cst_45 : f32 to vector<8x128xf32>
      %61 = arith.mulf %60, %59 : vector<8x128xf32>
      %cst_46 = arith.constant 5.000000e-01 : f32
      %62 = vector.broadcast %cst_46 : f32 to vector<8x128xf32>
      %63 = arith.addf %61, %62 : vector<8x128xf32>
      %64 = vector.extract_strided_slice %47 {offsets = [0, 256], sizes = [8, 128], strides = [1, 1]} : vector<8x512xf32> to vector<8x128xf32>
      %65 = math.tanh %64 : vector<8x128xf32>
      %66 = vector.extract_strided_slice %47 {offsets = [0, 384], sizes = [8, 128], strides = [1, 1]} : vector<8x512xf32> to vector<8x128xf32>
      %cst_47 = arith.constant 5.000000e-01 : f32
      %67 = vector.broadcast %cst_47 : f32 to vector<8x128xf32>
      %68 = arith.mulf %67, %66 : vector<8x128xf32>
      %69 = math.tanh %68 : vector<8x128xf32>
      %cst_48 = arith.constant 5.000000e-01 : f32
      %70 = vector.broadcast %cst_48 : f32 to vector<8x128xf32>
      %71 = arith.mulf %70, %69 : vector<8x128xf32>
      %cst_49 = arith.constant 5.000000e-01 : f32
      %72 = vector.broadcast %cst_49 : f32 to vector<8x128xf32>
      %73 = arith.addf %71, %72 : vector<8x128xf32>
      %74 = arith.mulf %63, %42 : vector<8x128xf32>
      %75 = arith.mulf %55, %65 : vector<8x128xf32>
      %76 = arith.addf %74, %75 : vector<8x128xf32>
      %77 = math.tanh %76 : vector<8x128xf32>
      %78 = arith.mulf %73, %77 : vector<8x128xf32>
      %79 = arith.index_cast %34 : i32 to index
      %c0_50 = arith.constant 0 : index
      %c0_51 = arith.constant 0 : index
      %80 = vector.load %arg4[%79, %c0_50, %c0_51] : memref<24x8x128xf32, #tpu.memory_space<vmem>>, vector<1x8x128xf32>
      %81 = vector.shape_cast %80 : vector<1x8x128xf32> to vector<8x128xf32>
      %82 = vector.shape_cast %78 : vector<8x128xf32> to vector<1x8x128xf32>
      tpu.vector_store %arg4[%79, %c0_50, %c0_51], %82 {strides = array<i32>} : memref<24x8x128xf32, #tpu.memory_space<vmem>>, vector<1x8x128xf32>,
      %83 = arith.index_cast %34 : i32 to index
      %c0_52 = arith.constant 0 : index
      %c0_53 = arith.constant 0 : index
      %84 = vector.load %arg5[%83, %c0_52, %c0_53] : memref<24x8x128xf32, #tpu.memory_space<vmem>>, vector<1x8x128xf32>
      %85 = vector.shape_cast %84 : vector<1x8x128xf32> to vector<8x128xf32>
      %86 = vector.shape_cast %76 : vector<8x128xf32> to vector<1x8x128xf32>
      tpu.vector_store %arg5[%83, %c0_52, %c0_53], %86 {strides = array<i32>} : memref<24x8x128xf32, #tpu.memory_space<vmem>>, vector<1x8x128xf32>,
      %c22_i32 = arith.constant 22 : i32
      %87 = arith.cmpi slt, %33, %c22_i32 : i32
      %88 = arith.select %87, %38, %arg11 : vector<8x128xf32>
      %89 = arith.select %87, %42, %arg12 : vector<8x128xf32>
      %90 = arith.addi %4, %31 : i32
      %c1_i32_54 = arith.constant 1 : i32
      %91 = arith.addi %90, %c1_i32_54 : i32
      %c1_i32_55 = arith.constant 1 : i32
      %92 = arith.addi %31, %c1_i32_55 : i32
      %93 = arith.subf %78, %88 : vector<8x128xf32>
      %cst_56 = arith.constant 0.333333343 : f32
      %94 = vector.broadcast %cst_56 : f32 to vector<8x128xf32>
      %95 = arith.mulf %94, %93 : vector<8x128xf32>
      %96 = arith.addf %95, %arg14 : vector<8x128xf32>
      %97 = arith.subf %76, %89 : vector<8x128xf32>
      %cst_57 = arith.constant 0.333333343 : f32
      %98 = vector.broadcast %cst_57 : f32 to vector<8x128xf32>
      %99 = arith.mulf %98, %97 : vector<8x128xf32>
      %100 = arith.addf %99, %arg16 : vector<8x128xf32>
      %101 = arith.index_cast %92 : i32 to index
      %c0_58 = arith.constant 0 : index
      %c0_59 = arith.constant 0 : index
      %102 = vector.load %arg2[%101, %c0_58, %c0_59] : memref<24x8x512xf32, #tpu.memory_space<vmem>>, vector<1x8x512xf32>
      %103 = vector.shape_cast %102 : vector<1x8x512xf32> to vector<8x512xf32>
      %cst_60 = arith.constant dense<0.000000e+00> : vector<8x512xf32>
      %104 = tpu.matmul %96, %3, %cst_60 {dimension_numbers = #tpu.dot_dimension_numbers<[1], [0], [0], [1], [0, 0, 1, 1], [], []>} : vector<8x128xf32>, vector<128x512xf32>, vector<8x512xf32> -> vector<8x512xf32>
      %105 = arith.addf %103, %104 : vector<8x512xf32>
      %106 = vector.extract_strided_slice %105 {offsets = [0, 0], sizes = [8, 128], strides = [1, 1]} : vector<8x512xf32> to vector<8x128xf32>
      %cst_61 = arith.constant 5.000000e-01 : f32
      %107 = vector.broadcast %cst_61 : f32 to vector<8x128xf32>
      %108 = arith.mulf %107, %106 : vector<8x128xf32>
      %109 = math.tanh %108 : vector<8x128xf32>
      %cst_62 = arith.constant 5.000000e-01 : f32
      %110 = vector.broadcast %cst_62 : f32 to vector<8x128xf32>
      %111 = arith.mulf %110, %109 : vector<8x128xf32>
      %cst_63 = arith.constant 5.000000e-01 : f32
      %112 = vector.broadcast %cst_63 : f32 to vector<8x128xf32>
      %113 = arith.addf %111, %112 : vector<8x128xf32>
      %114 = vector.extract_strided_slice %105 {offsets = [0, 128], sizes = [8, 128], strides = [1, 1]} : vector<8x512xf32> to vector<8x128xf32>
      %cst_64 = arith.constant 5.000000e-01 : f32
      %115 = vector.broadcast %cst_64 : f32 to vector<8x128xf32>
      %116 = arith.mulf %115, %114 : vector<8x128xf32>
      %117 = math.tanh %116 : vector<8x128xf32>
      %cst_65 = arith.constant 5.000000e-01 : f32
      %118 = vector.broadcast %cst_65 : f32 to vector<8x128xf32>
      %119 = arith.mulf %118, %117 : vector<8x128xf32>
      %cst_66 = arith.constant 5.000000e-01 : f32
      %120 = vector.broadcast %cst_66 : f32 to vector<8x128xf32>
      %121 = arith.addf %119, %120 : vector<8x128xf32>
      %122 = vector.extract_strided_slice %105 {offsets = [0, 256], sizes = [8, 128], strides = [1, 1]} : vector<8x512xf32> to vector<8x128xf32>
      %123 = math.tanh %122 : vector<8x128xf32>
      %124 = vector.extract_strided_slice %105 {offsets = [0, 384], sizes = [8, 128], strides = [1, 1]} : vector<8x512xf32> to vector<8x128xf32>
      %cst_67 = arith.constant 5.000000e-01 : f32
      %125 = vector.broadcast %cst_67 : f32 to vector<8x128xf32>
      %126 = arith.mulf %125, %124 : vector<8x128xf32>
      %127 = math.tanh %126 : vector<8x128xf32>
      %cst_68 = arith.constant 5.000000e-01 : f32
      %128 = vector.broadcast %cst_68 : f32 to vector<8x128xf32>
      %129 = arith.mulf %128, %127 : vector<8x128xf32>
      %cst_69 = arith.constant 5.000000e-01 : f32
      %130 = vector.broadcast %cst_69 : f32 to vector<8x128xf32>
      %131 = arith.addf %129, %130 : vector<8x128xf32>
      %132 = arith.mulf %121, %100 : vector<8x128xf32>
      %133 = arith.mulf %113, %123 : vector<8x128xf32>
      %134 = arith.addf %132, %133 : vector<8x128xf32>
      %135 = math.tanh %134 : vector<8x128xf32>
      %136 = arith.mulf %131, %135 : vector<8x128xf32>
      %137 = arith.index_cast %92 : i32 to index
      %c0_70 = arith.constant 0 : index
      %c0_71 = arith.constant 0 : index
      %138 = vector.load %arg4[%137, %c0_70, %c0_71] : memref<24x8x128xf32, #tpu.memory_space<vmem>>, vector<1x8x128xf32>
      %139 = vector.shape_cast %138 : vector<1x8x128xf32> to vector<8x128xf32>
      %140 = vector.shape_cast %136 : vector<8x128xf32> to vector<1x8x128xf32>
      tpu.vector_store %arg4[%137, %c0_70, %c0_71], %140 {strides = array<i32>} : memref<24x8x128xf32, #tpu.memory_space<vmem>>, vector<1x8x128xf32>,
      %141 = arith.index_cast %92 : i32 to index
      %c0_72 = arith.constant 0 : index
      %c0_73 = arith.constant 0 : index
      %142 = vector.load %arg5[%141, %c0_72, %c0_73] : memref<24x8x128xf32, #tpu.memory_space<vmem>>, vector<1x8x128xf32>
      %143 = vector.shape_cast %142 : vector<1x8x128xf32> to vector<8x128xf32>
      %144 = vector.shape_cast %134 : vector<8x128xf32> to vector<1x8x128xf32>
      tpu.vector_store %arg5[%141, %c0_72, %c0_73], %144 {strides = array<i32>} : memref<24x8x128xf32, #tpu.memory_space<vmem>>, vector<1x8x128xf32>,
      %c22_i32_74 = arith.constant 22 : i32
      %145 = arith.cmpi slt, %91, %c22_i32_74 : i32
      %146 = arith.select %145, %96, %88 : vector<8x128xf32>
      %147 = arith.select %145, %100, %89 : vector<8x128xf32>
      %148 = arith.addi %4, %31 : i32
      %c2_i32 = arith.constant 2 : i32
      %149 = arith.addi %148, %c2_i32 : i32
      %c2_i32_75 = arith.constant 2 : i32
      %150 = arith.addi %31, %c2_i32_75 : i32
      %151 = arith.subf %136, %146 : vector<8x128xf32>
      %cst_76 = arith.constant 0.333333343 : f32
      %152 = vector.broadcast %cst_76 : f32 to vector<8x128xf32>
      %153 = arith.mulf %152, %151 : vector<8x128xf32>
      %154 = arith.addf %153, %78 : vector<8x128xf32>
      %155 = arith.subf %134, %147 : vector<8x128xf32>
      %cst_77 = arith.constant 0.333333343 : f32
      %156 = vector.broadcast %cst_77 : f32 to vector<8x128xf32>
      %157 = arith.mulf %156, %155 : vector<8x128xf32>
      %158 = arith.addf %157, %76 : vector<8x128xf32>
      %159 = arith.index_cast %150 : i32 to index
      %c0_78 = arith.constant 0 : index
      %c0_79 = arith.constant 0 : index
      %160 = vector.load %arg2[%159, %c0_78, %c0_79] : memref<24x8x512xf32, #tpu.memory_space<vmem>>, vector<1x8x512xf32>
      %161 = vector.shape_cast %160 : vector<1x8x512xf32> to vector<8x512xf32>
      %cst_80 = arith.constant dense<0.000000e+00> : vector<8x512xf32>
      %162 = tpu.matmul %154, %3, %cst_80 {dimension_numbers = #tpu.dot_dimension_numbers<[1], [0], [0], [1], [0, 0, 1, 1], [], []>} : vector<8x128xf32>, vector<128x512xf32>, vector<8x512xf32> -> vector<8x512xf32>
      %163 = arith.addf %161, %162 : vector<8x512xf32>
      %164 = vector.extract_strided_slice %163 {offsets = [0, 0], sizes = [8, 128], strides = [1, 1]} : vector<8x512xf32> to vector<8x128xf32>
      %cst_81 = arith.constant 5.000000e-01 : f32
      %165 = vector.broadcast %cst_81 : f32 to vector<8x128xf32>
      %166 = arith.mulf %165, %164 : vector<8x128xf32>
      %167 = math.tanh %166 : vector<8x128xf32>
      %cst_82 = arith.constant 5.000000e-01 : f32
      %168 = vector.broadcast %cst_82 : f32 to vector<8x128xf32>
      %169 = arith.mulf %168, %167 : vector<8x128xf32>
      %cst_83 = arith.constant 5.000000e-01 : f32
      %170 = vector.broadcast %cst_83 : f32 to vector<8x128xf32>
      %171 = arith.addf %169, %170 : vector<8x128xf32>
      %172 = vector.extract_strided_slice %163 {offsets = [0, 128], sizes = [8, 128], strides = [1, 1]} : vector<8x512xf32> to vector<8x128xf32>
      %cst_84 = arith.constant 5.000000e-01 : f32
      %173 = vector.broadcast %cst_84 : f32 to vector<8x128xf32>
      %174 = arith.mulf %173, %172 : vector<8x128xf32>
      %175 = math.tanh %174 : vector<8x128xf32>
      %cst_85 = arith.constant 5.000000e-01 : f32
      %176 = vector.broadcast %cst_85 : f32 to vector<8x128xf32>
      %177 = arith.mulf %176, %175 : vector<8x128xf32>
      %cst_86 = arith.constant 5.000000e-01 : f32
      %178 = vector.broadcast %cst_86 : f32 to vector<8x128xf32>
      %179 = arith.addf %177, %178 : vector<8x128xf32>
      %180 = vector.extract_strided_slice %163 {offsets = [0, 256], sizes = [8, 128], strides = [1, 1]} : vector<8x512xf32> to vector<8x128xf32>
      %181 = math.tanh %180 : vector<8x128xf32>
      %182 = vector.extract_strided_slice %163 {offsets = [0, 384], sizes = [8, 128], strides = [1, 1]} : vector<8x512xf32> to vector<8x128xf32>
      %cst_87 = arith.constant 5.000000e-01 : f32
      %183 = vector.broadcast %cst_87 : f32 to vector<8x128xf32>
      %184 = arith.mulf %183, %182 : vector<8x128xf32>
      %185 = math.tanh %184 : vector<8x128xf32>
      %cst_88 = arith.constant 5.000000e-01 : f32
      %186 = vector.broadcast %cst_88 : f32 to vector<8x128xf32>
      %187 = arith.mulf %186, %185 : vector<8x128xf32>
      %cst_89 = arith.constant 5.000000e-01 : f32
      %188 = vector.broadcast %cst_89 : f32 to vector<8x128xf32>
      %189 = arith.addf %187, %188 : vector<8x128xf32>
      %190 = arith.mulf %179, %158 : vector<8x128xf32>
      %191 = arith.mulf %171, %181 : vector<8x128xf32>
      %192 = arith.addf %190, %191 : vector<8x128xf32>
      %193 = math.tanh %192 : vector<8x128xf32>
      %194 = arith.mulf %189, %193 : vector<8x128xf32>
      %195 = arith.index_cast %150 : i32 to index
      %c0_90 = arith.constant 0 : index
      %c0_91 = arith.constant 0 : index
      %196 = vector.load %arg4[%195, %c0_90, %c0_91] : memref<24x8x128xf32, #tpu.memory_space<vmem>>, vector<1x8x128xf32>
      %197 = vector.shape_cast %196 : vector<1x8x128xf32> to vector<8x128xf32>
      %198 = vector.shape_cast %194 : vector<8x128xf32> to vector<1x8x128xf32>
      tpu.vector_store %arg4[%195, %c0_90, %c0_91], %198 {strides = array<i32>} : memref<24x8x128xf32, #tpu.memory_space<vmem>>, vector<1x8x128xf32>,
      %199 = arith.index_cast %150 : i32 to index
      %c0_92 = arith.constant 0 : index
      %c0_93 = arith.constant 0 : index
      %200 = vector.load %arg5[%199, %c0_92, %c0_93] : memref<24x8x128xf32, #tpu.memory_space<vmem>>, vector<1x8x128xf32>
      %201 = vector.shape_cast %200 : vector<1x8x128xf32> to vector<8x128xf32>
      %202 = vector.shape_cast %192 : vector<8x128xf32> to vector<1x8x128xf32>
      tpu.vector_store %arg5[%199, %c0_92, %c0_93], %202 {strides = array<i32>} : memref<24x8x128xf32, #tpu.memory_space<vmem>>, vector<1x8x128xf32>,
      %c22_i32_94 = arith.constant 22 : i32
      %203 = arith.cmpi slt, %149, %c22_i32_94 : i32
      %204 = arith.select %203, %154, %146 : vector<8x128xf32>
      %205 = arith.select %203, %158, %147 : vector<8x128xf32>
      %206 = arith.addi %4, %31 : i32
      %c3_i32 = arith.constant 3 : i32
      %207 = arith.addi %206, %c3_i32 : i32
      %c3_i32_95 = arith.constant 3 : i32
      %208 = arith.addi %31, %c3_i32_95 : i32
      %209 = arith.subf %194, %204 : vector<8x128xf32>
      %cst_96 = arith.constant 0.333333343 : f32
      %210 = vector.broadcast %cst_96 : f32 to vector<8x128xf32>
      %211 = arith.mulf %210, %209 : vector<8x128xf32>
      %212 = arith.addf %211, %136 : vector<8x128xf32>
      %213 = arith.subf %192, %205 : vector<8x128xf32>
      %cst_97 = arith.constant 0.333333343 : f32
      %214 = vector.broadcast %cst_97 : f32 to vector<8x128xf32>
      %215 = arith.mulf %214, %213 : vector<8x128xf32>
      %216 = arith.addf %215, %134 : vector<8x128xf32>
      %217 = arith.index_cast %208 : i32 to index
      %c0_98 = arith.constant 0 : index
      %c0_99 = arith.constant 0 : index
      %218 = vector.load %arg2[%217, %c0_98, %c0_99] : memref<24x8x512xf32, #tpu.memory_space<vmem>>, vector<1x8x512xf32>
      %219 = vector.shape_cast %218 : vector<1x8x512xf32> to vector<8x512xf32>
      %cst_100 = arith.constant dense<0.000000e+00> : vector<8x512xf32>
      %220 = tpu.matmul %212, %3, %cst_100 {dimension_numbers = #tpu.dot_dimension_numbers<[1], [0], [0], [1], [0, 0, 1, 1], [], []>} : vector<8x128xf32>, vector<128x512xf32>, vector<8x512xf32> -> vector<8x512xf32>
      %221 = arith.addf %219, %220 : vector<8x512xf32>
      %222 = vector.extract_strided_slice %221 {offsets = [0, 0], sizes = [8, 128], strides = [1, 1]} : vector<8x512xf32> to vector<8x128xf32>
      %cst_101 = arith.constant 5.000000e-01 : f32
      %223 = vector.broadcast %cst_101 : f32 to vector<8x128xf32>
      %224 = arith.mulf %223, %222 : vector<8x128xf32>
      %225 = math.tanh %224 : vector<8x128xf32>
      %cst_102 = arith.constant 5.000000e-01 : f32
      %226 = vector.broadcast %cst_102 : f32 to vector<8x128xf32>
      %227 = arith.mulf %226, %225 : vector<8x128xf32>
      %cst_103 = arith.constant 5.000000e-01 : f32
      %228 = vector.broadcast %cst_103 : f32 to vector<8x128xf32>
      %229 = arith.addf %227, %228 : vector<8x128xf32>
      %230 = vector.extract_strided_slice %221 {offsets = [0, 128], sizes = [8, 128], strides = [1, 1]} : vector<8x512xf32> to vector<8x128xf32>
      %cst_104 = arith.constant 5.000000e-01 : f32
      %231 = vector.broadcast %cst_104 : f32 to vector<8x128xf32>
      %232 = arith.mulf %231, %230 : vector<8x128xf32>
      %233 = math.tanh %232 : vector<8x128xf32>
      %cst_105 = arith.constant 5.000000e-01 : f32
      %234 = vector.broadcast %cst_105 : f32 to vector<8x128xf32>
      %235 = arith.mulf %234, %233 : vector<8x128xf32>
      %cst_106 = arith.constant 5.000000e-01 : f32
      %236 = vector.broadcast %cst_106 : f32 to vector<8x128xf32>
      %237 = arith.addf %235, %236 : vector<8x128xf32>
      %238 = vector.extract_strided_slice %221 {offsets = [0, 256], sizes = [8, 128], strides = [1, 1]} : vector<8x512xf32> to vector<8x128xf32>
      %239 = math.tanh %238 : vector<8x128xf32>
      %240 = vector.extract_strided_slice %221 {offsets = [0, 384], sizes = [8, 128], strides = [1, 1]} : vector<8x512xf32> to vector<8x128xf32>
      %cst_107 = arith.constant 5.000000e-01 : f32
      %241 = vector.broadcast %cst_107 : f32 to vector<8x128xf32>
      %242 = arith.mulf %241, %240 : vector<8x128xf32>
      %243 = math.tanh %242 : vector<8x128xf32>
      %cst_108 = arith.constant 5.000000e-01 : f32
      %244 = vector.broadcast %cst_108 : f32 to vector<8x128xf32>
      %245 = arith.mulf %244, %243 : vector<8x128xf32>
      %cst_109 = arith.constant 5.000000e-01 : f32
      %246 = vector.broadcast %cst_109 : f32 to vector<8x128xf32>
      %247 = arith.addf %245, %246 : vector<8x128xf32>
      %248 = arith.mulf %237, %216 : vector<8x128xf32>
      %249 = arith.mulf %229, %239 : vector<8x128xf32>
      %250 = arith.addf %248, %249 : vector<8x128xf32>
      %251 = math.tanh %250 : vector<8x128xf32>
      %252 = arith.mulf %247, %251 : vector<8x128xf32>
      %253 = arith.index_cast %208 : i32 to index
      %c0_110 = arith.constant 0 : index
      %c0_111 = arith.constant 0 : index
      %254 = vector.load %arg4[%253, %c0_110, %c0_111] : memref<24x8x128xf32, #tpu.memory_space<vmem>>, vector<1x8x128xf32>
      %255 = vector.shape_cast %254 : vector<1x8x128xf32> to vector<8x128xf32>
      %256 = vector.shape_cast %252 : vector<8x128xf32> to vector<1x8x128xf32>
      tpu.vector_store %arg4[%253, %c0_110, %c0_111], %256 {strides = array<i32>} : memref<24x8x128xf32, #tpu.memory_space<vmem>>, vector<1x8x128xf32>,
      %257 = arith.index_cast %208 : i32 to index
      %c0_112 = arith.constant 0 : index
      %c0_113 = arith.constant 0 : index
      %258 = vector.load %arg5[%257, %c0_112, %c0_113] : memref<24x8x128xf32, #tpu.memory_space<vmem>>, vector<1x8x128xf32>
      %259 = vector.shape_cast %258 : vector<1x8x128xf32> to vector<8x128xf32>
      %260 = vector.shape_cast %250 : vector<8x128xf32> to vector<1x8x128xf32>
      tpu.vector_store %arg5[%257, %c0_112, %c0_113], %260 {strides = array<i32>} : memref<24x8x128xf32, #tpu.memory_space<vmem>>, vector<1x8x128xf32>,
      %c22_i32_114 = arith.constant 22 : i32
      %261 = arith.cmpi slt, %207, %c22_i32_114 : i32
      %262 = arith.select %261, %212, %204 : vector<8x128xf32>
      %263 = arith.select %261, %216, %205 : vector<8x128xf32>
      scf.yield %262, %263, %194, %252, %192, %250 : vector<8x128xf32>, vector<8x128xf32>, vector<8x128xf32>, vector<8x128xf32>, vector<8x128xf32>, vector<8x128xf32>
    }
    %c6_i32_18 = arith.constant 6 : i32
    %c0_19 = arith.constant 0 : index
    %c0_20 = arith.constant 0 : index
    %17 = vector.load %arg6[%c0_19, %c0_20] : memref<8x128xf32, #tpu.memory_space<vmem>>, vector<8x128xf32>
    tpu.vector_store %arg6[%c0_19, %c0_20], %16#0 {strides = array<i32>} : memref<8x128xf32, #tpu.memory_space<vmem>>, vector<8x128xf32>,
    %c0_21 = arith.constant 0 : index
    %c0_22 = arith.constant 0 : index
    %18 = vector.load %arg7[%c0_21, %c0_22] : memref<8x128xf32, #tpu.memory_space<vmem>>, vector<8x128xf32>
    tpu.vector_store %arg7[%c0_21, %c0_22], %16#1 {strides = array<i32>} : memref<8x128xf32, #tpu.memory_space<vmem>>, vector<8x128xf32>,
    %c0_23 = arith.constant 0 : index
    %c0_24 = arith.constant 0 : index
    %c0_25 = arith.constant 0 : index
    %19 = vector.load %arg8[%c0_23, %c0_24, %c0_25] : memref<2x8x128xf32, #tpu.memory_space<vmem>>, vector<1x8x128xf32>
    %20 = vector.shape_cast %19 : vector<1x8x128xf32> to vector<8x128xf32>
    %21 = vector.shape_cast %16#2 : vector<8x128xf32> to vector<1x8x128xf32>
    tpu.vector_store %arg8[%c0_23, %c0_24, %c0_25], %21 {strides = array<i32>} : memref<2x8x128xf32, #tpu.memory_space<vmem>>, vector<1x8x128xf32>,
    %c0_26 = arith.constant 0 : index
    %c0_27 = arith.constant 0 : index
    %c0_28 = arith.constant 0 : index
    %22 = vector.load %arg9[%c0_26, %c0_27, %c0_28] : memref<2x8x128xf32, #tpu.memory_space<vmem>>, vector<1x8x128xf32>
    %23 = vector.shape_cast %22 : vector<1x8x128xf32> to vector<8x128xf32>
    %24 = vector.shape_cast %16#4 : vector<8x128xf32> to vector<1x8x128xf32>
    tpu.vector_store %arg9[%c0_26, %c0_27, %c0_28], %24 {strides = array<i32>} : memref<2x8x128xf32, #tpu.memory_space<vmem>>, vector<1x8x128xf32>,
    %c1_29 = arith.constant 1 : index
    %c0_30 = arith.constant 0 : index
    %c0_31 = arith.constant 0 : index
    %25 = vector.load %arg8[%c1_29, %c0_30, %c0_31] : memref<2x8x128xf32, #tpu.memory_space<vmem>>, vector<1x8x128xf32>
    %26 = vector.shape_cast %25 : vector<1x8x128xf32> to vector<8x128xf32>
    %27 = vector.shape_cast %16#3 : vector<8x128xf32> to vector<1x8x128xf32>
    tpu.vector_store %arg8[%c1_29, %c0_30, %c0_31], %27 {strides = array<i32>} : memref<2x8x128xf32, #tpu.memory_space<vmem>>, vector<1x8x128xf32>,
    %c1_32 = arith.constant 1 : index
    %c0_33 = arith.constant 0 : index
    %c0_34 = arith.constant 0 : index
    %28 = vector.load %arg9[%c1_32, %c0_33, %c0_34] : memref<2x8x128xf32, #tpu.memory_space<vmem>>, vector<1x8x128xf32>
    %29 = vector.shape_cast %28 : vector<1x8x128xf32> to vector<8x128xf32>
    %30 = vector.shape_cast %16#5 : vector<8x128xf32> to vector<1x8x128xf32>
    tpu.vector_store %arg9[%c1_32, %c0_33, %c0_34], %30 {strides = array<i32>} : memref<2x8x128xf32, #tpu.memory_space<vmem>>, vector<1x8x128xf32>,
    return
  }
  func.func @transform_0(%arg0: i32, %arg1: i32) -> (i32, i32, i32) {
    %c0_i32 = arith.constant 0 : i32
    %c0_i32_0 = arith.constant 0 : i32
    return %arg1, %arg0, %c0_i32 : i32, i32, i32
  }
  func.func @transform_1(%arg0: i32, %arg1: i32) -> (i32, i32) {
    %c0_i32 = arith.constant 0 : i32
    %c0_i32_0 = arith.constant 0 : i32
    %c0_i32_1 = arith.constant 0 : i32
    return %c0_i32, %c0_i32_0 : i32, i32
  }
  func.func @transform_2(%arg0: i32, %arg1: i32) -> (i32, i32, i32) {
    %c0_i32 = arith.constant 0 : i32
    %c0_i32_0 = arith.constant 0 : i32
    return %arg1, %arg0, %c0_i32 : i32, i32, i32
  }
  func.func @transform_3(%arg0: i32, %arg1: i32) -> (i32, i32, i32) {
    %c0_i32 = arith.constant 0 : i32
    %c0_i32_0 = arith.constant 0 : i32
    return %arg1, %arg0, %c0_i32 : i32, i32, i32
  }
  func.func @transform_4(%arg0: i32, %arg1: i32) -> (i32, i32) {
    %c0_i32 = arith.constant 0 : i32
    %c0_i32_0 = arith.constant 0 : i32
    return %arg0, %c0_i32 : i32, i32
  }
  func.func @transform_5(%arg0: i32, %arg1: i32) -> (i32, i32) {
    %c0_i32 = arith.constant 0 : i32
    %c0_i32_0 = arith.constant 0 : i32
    return %arg0, %c0_i32 : i32, i32
  }
}

</mosaic_0001>

<llo_original>
// kernel: tpu_custom_call.1
$region0: #{tpu_custom_call.1}
  #allocation0 [shape = 'u32[]', space=smem, size = 0x4, offset = 0x4, fixed_abs, tag = 'smem constant byte address 0x4 - core index']
  #allocation1 [shape = 'u32[144,128]{1,0:T(1,128)}', space=vmem, size = 0x12000, scoped, tag = 'internal scratch']
  #allocation2 [shape = 'f32[2,8,128]{2,1,0:T(8,128)}', space=vmem, size = 0x2000, scoped, tag = 'scratch operand']
  #allocation3 [shape = 'f32[2,8,128]{2,1,0:T(8,128)}', space=vmem, size = 0x2000, scoped, tag = 'scratch operand']
  %s0 = inlined_call_operand.hbm [shape: f32[24,8,512], index: 0, kind: input, shape index: {}]
  %s1 = inlined_call_operand.hbm [shape: f32[128,512], index: 1, kind: input, shape index: {}]
  %s2 = inlined_call_operand.hbm [shape: f32[24,8,128], index: 2, kind: output, shape index: {0}]
  %s3 = inlined_call_operand.hbm [shape: f32[24,8,128], index: 3, kind: output, shape index: {1}]
  %s4 = inlined_call_operand.hbm [shape: f32[8,128], index: 4, kind: output, shape index: {2}]
  %s5 = inlined_call_operand.hbm [shape: f32[8,128], index: 5, kind: output, shape index: {3}]
  %6 = xla_tuple %s2, %s3, %s4, %s5
  %s7 = sld [smem:[#allocation0]]
  $region61: #{tpu_custom_call.1} parent=0
    _
  %s9 = ssub.s32 1, %s7
  %s10 = scalar_select 0, %s9, %s7
  $region1: #{tpu_custom_call.1} parent=0
    #allocation4 [shape = 'u8[393216]{0}', space=vmem, size = 0x60000, scoped, tag = 'input window, operand 0, single buffered']
    #allocation5 [shape = 's32[1]{0}', space=sflag, size = 0x4, scoped, tag = 'scoped memory for tpu_custom_call.1']
    #allocation6 [shape = 's32[1]{0}', space=sflag, size = 0x4, scoped, tag = 'scoped memory for tpu_custom_call.1']
    #allocation7 [shape = 'u8[262144]{0}', space=vmem, size = 0x40000, scoped, tag = 'input window, operand 1, single buffered']
    #allocation8 [shape = 's32[1]{0}', space=sflag, size = 0x4, scoped, tag = 'scoped memory for tpu_custom_call.1']
    #allocation9 [shape = 'u8[98304]{0}', space=vmem, size = 0x18000, scoped, tag = 'output window, operand 0, single buffered']
    #allocation10 [shape = 'u8[98304]{0}', space=vmem, size = 0x18000, scoped, tag = 'output window, operand 1, single buffered']
    #allocation11 [shape = 's32[1]{0}', space=sflag, size = 0x4, scoped, tag = 'scoped memory for tpu_custom_call.1']
    #allocation12 [shape = 'u8[4096]{0}', space=vmem, size = 0x1000, scoped, tag = 'output window, operand 2, single buffered']
    #allocation13 [shape = 'u8[4096]{0}', space=vmem, size = 0x1000, scoped, tag = 'output window, operand 3, single buffered']
    #allocation14 [shape = 's32[1]{0}', space=sflag, size = 0x4, scoped, tag = 'scoped memory for tpu_custom_call.1']
    %11 = vsyncpa [#allocation5], 0
    %12 = vsyncpa [#allocation8], 0
    %13 = vsyncpa [#allocation6], 0
    %14 = vsyncpa [#allocation11], 0
    %15 = vsyncpa [#allocation14], 0
    // Predicated region
    $region2: #{tpu_custom_call.1} parent=1 // pred_check
      _
    $region3: #{tpu_custom_call.1} parent=1 // pred_check_branch
      %17 = sbr.rel (0) target = $region5
    $region4: #{tpu_custom_call.1} parent=1 // pred_region
      %s19 = ssub.s32 12288, 12288
      %20 = vsyncadd [#allocation5], %s19
      %s21 = sshll.u32 [#allocation4], 4
      %s22 = int_to_ptr.vmem [resolvable:$true] %s21
      %27 = dma.hbm_to_vmem [thread:$0]  %s0, 12288, %s22, [#allocation5], 512, 512, 32
    $region5: #{tpu_custom_call.1} parent=1 // pred_fallthru
      _
    // Predicated region
    $region6: #{tpu_custom_call.1} parent=1 // pred_check
      _
    $region7: #{tpu_custom_call.1} parent=1 // pred_check_branch
      %29 = sbr.rel (0) target = $region9
    $region8: #{tpu_custom_call.1} parent=1 // pred_region
      %s31 = ssub.s32 8192, 8192
      %32 = vsyncadd [#allocation8], %s31
      %s33 = sshll.u32 [#allocation7], 4
      %s34 = int_to_ptr.vmem [resolvable:$true] %s33
      %39 = dma.hbm_to_vmem [thread:$0]  %s1, 8192, %s34, [#allocation8], 512, 512, 32
    $region9: #{tpu_custom_call.1} parent=1 // pred_fallthru
      _
    // Predicated region
    $region10: #{tpu_custom_call.1} parent=1 // pred_check
      _
    $region11: #{tpu_custom_call.1} parent=1 // pred_check_branch
      %41 = sbr.rel (0) target = $region13
    $region12: #{tpu_custom_call.1} parent=1 // pred_region
      %42 = dma.done [#allocation5], 12288
    $region13: #{tpu_custom_call.1} parent=1 // pred_fallthru
      _
    // Predicated region
    $region14: #{tpu_custom_call.1} parent=1 // pred_check
      _
    $region15: #{tpu_custom_call.1} parent=1 // pred_check_branch
      %44 = sbr.rel (0) target = $region17
    $region16: #{tpu_custom_call.1} parent=1 // pred_region
      %45 = dma.done [#allocation8], 8192
    $region17: #{tpu_custom_call.1} parent=1 // pred_fallthru
      _
    %p46 = scmp.eq.s32.totalorder 0, 0
    // Predicated region
    $region18: #{tpu_custom_call.1} parent=1 // pred_check
      %p47 = pneg %p46
    $region19: #{tpu_custom_call.1} parent=1 // pred_check_branch
      %49 = sbr.rel (%p47) target = $region21
    $region20: #{tpu_custom_call.1} parent=1 // pred_region
      %50 = vst [vmem:[#allocation12] sm:$0xff] 0.0
      %51 = vst [vmem:[#allocation13] sm:$0xff] 0.0
      %52 = vst [vmem:[#allocation2] sm:$0xff] 0.0
      %53 = vst [vmem:[#allocation2 + $0x8] sm:$0xff] 0.0
      %54 = vst [vmem:[#allocation3] sm:$0xff] 0.0
      %55 = vst [vmem:[#allocation3 + $0x8] sm:$0xff] 0.0
    $region21: #{tpu_custom_call.1} parent=1 // pred_fallthru
      _
    %v56 = vld [vmem:[#allocation7] sm:$0xff]
    %v57 = vld [vmem:[#allocation7 + $0x8] sm:$0xff]
    %v58 = vld [vmem:[#allocation7 + $0x10] sm:$0xff]
    %v59 = vld [vmem:[#allocation7 + $0x18] sm:$0xff]
    %v60 = vld [vmem:[#allocation7 + $0x20] sm:$0xff]
    %v61 = vld [vmem:[#allocation7 + $0x28] sm:$0xff]
    %v62 = vld [vmem:[#allocation7 + $0x30] sm:$0xff]
    %v63 = vld [vmem:[#allocation7 + $0x38] sm:$0xff]
    %v64 = vld [vmem:[#allocation7 + $0x40] sm:$0xff]
    %v65 = vld [vmem:[#allocation7 + $0x48] sm:$0xff]
    %v66 = vld [vmem:[#allocation7 + $0x50] sm:$0xff]
    %v67 = vld [vmem:[#allocation7 + $0x58] sm:$0xff]
    %v68 = vld [vmem:[#allocation7 + $0x60] sm:$0xff]
    %v69 = vld [vmem:[#allocation7 + $0x68] sm:$0xff]
    %v70 = vld [vmem:[#allocation7 + $0x70] sm:$0xff]
    %v71 = vld [vmem:[#allocation7 + $0x78] sm:$0xff]
    %v72 = vld [vmem:[#allocation7 + $0x80] sm:$0xff]
    %v73 = vld [vmem:[#allocation7 + $0x88] sm:$0xff]
    %v74 = vld [vmem:[#allocation7 + $0x90] sm:$0xff]
    %v75 = vld [vmem:[#allocation7 + $0x98] sm:$0xff]
    %v76 = vld [vmem:[#allocation7 + $0xa0] sm:$0xff]
    %v77 = vld [vmem:[#allocation7 + $0xa8] sm:$0xff]
    %v78 = vld [vmem:[#allocation7 + $0xb0] sm:$0xff]
    %v79 = vld [vmem:[#allocation7 + $0xb8] sm:$0xff]
    %v80 = vld [vmem:[#allocation7 + $0xc0] sm:$0xff]
    %v81 = vld [vmem:[#allocation7 + $0xc8] sm:$0xff]
    %v82 = vld [vmem:[#allocation7 + $0xd0] sm:$0xff]
    %v83 = vld [vmem:[#allocation7 + $0xd8] sm:$0xff]
    %v84 = vld [vmem:[#allocation7 + $0xe0] sm:$0xff]
    %v85 = vld [vmem:[#allocation7 + $0xe8] sm:$0xff]
    %v86 = vld [vmem:[#allocation7 + $0xf0] sm:$0xff]
    %v87 = vld [vmem:[#allocation7 + $0xf8] sm:$0xff]
    %v88 = vld [vmem:[#allocation7 + $0x100] sm:$0xff]
    %v89 = vld [vmem:[#allocation7 + $0x108] sm:$0xff]
    %v90 = vld [vmem:[#allocation7 + $0x110] sm:$0xff]
    %v91 = vld [vmem:[#allocation7 + $0x118] sm:$0xff]
    %v92 = vld [vmem:[#allocation7 + $0x120] sm:$0xff]
    %v93 = vld [vmem:[#allocation7 + $0x128] sm:$0xff]
    %v94 = vld [vmem:[#allocation7 + $0x130] sm:$0xff]
    %v95 = vld [vmem:[#allocation7 + $0x138] sm:$0xff]
    %v96 = vld [vmem:[#allocation7 + $0x140] sm:$0xff]
    %v97 = vld [vmem:[#allocation7 + $0x148] sm:$0xff]
    %v98 = vld [vmem:[#allocation7 + $0x150] sm:$0xff]
    %v99 = vld [vmem:[#allocation7 + $0x158] sm:$0xff]
    %v100 = vld [vmem:[#allocation7 + $0x160] sm:$0xff]
    %v101 = vld [vmem:[#allocation7 + $0x168] sm:$0xff]
    %v102 = vld [vmem:[#allocation7 + $0x170] sm:$0xff]
    %v103 = vld [vmem:[#allocation7 + $0x178] sm:$0xff]
    %v104 = vld [vmem:[#allocation7 + $0x180] sm:$0xff]
    %v105 = vld [vmem:[#allocation7 + $0x188] sm:$0xff]
    %v106 = vld [vmem:[#allocation7 + $0x190] sm:$0xff]
    %v107 = vld [vmem:[#allocation7 + $0x198] sm:$0xff]
    %v108 = vld [vmem:[#allocation7 + $0x1a0] sm:$0xff]
    %v109 = vld [vmem:[#allocation7 + $0x1a8] sm:$0xff]
    %v110 = vld [vmem:[#allocation7 + $0x1b0] sm:$0xff]
    %v111 = vld [vmem:[#allocation7 + $0x1b8] sm:$0xff]
    %v112 = vld [vmem:[#allocation7 + $0x1c0] sm:$0xff]
    %v113 = vld [vmem:[#allocation7 + $0x1c8] sm:$0xff]
    %v114 = vld [vmem:[#allocation7 + $0x1d0] sm:$0xff]
    %v115 = vld [vmem:[#allocation7 + $0x1d8] sm:$0xff]
    %v116 = vld [vmem:[#allocation7 + $0x1e0] sm:$0xff]
    %v117 = vld [vmem:[#allocation7 + $0x1e8] sm:$0xff]
    %v118 = vld [vmem:[#allocation7 + $0x1f0] sm:$0xff]
    %v119 = vld [vmem:[#allocation7 + $0x1f8] sm:$0xff]
    %s120 = smul.u32 0, 24
    %v121 = vld [vmem:[#allocation2] sm:$0xff]
    %s122 = scalar_lea.vmem [#allocation2], 8
    %v123 = vld [vmem:[%s122] sm:$0xff]
    %v124 = vld [vmem:[#allocation3] sm:$0xff]
    %s125 = scalar_lea.vmem [#allocation3], 8
    %v126 = vld [vmem:[%s125] sm:$0xff]
    %v127 = vld [vmem:[#allocation12] sm:$0xff]
    %v128 = vld [vmem:[#allocation13] sm:$0xff]
    loop: start=0, step=1, limit=6
    $region22: #{tpu_custom_call.1} parent=1 // loop_pre_header
      _
    $region23: #{tpu_custom_call.1} parent=1 // loop_header
      %s130 = sphi 0, %s134
      %p131 = scmp.ge.s32.totalorder %s130, 6
      %v135 = vphi %v127, %v899
      %v136 = vphi %v128, %v900
      %v137 = vphi %v121, %v699
      %v138 = vphi %v123, %v889
      %v139 = vphi %v124, %v697
      %v140 = vphi %v126, %v887
    $region24: #{tpu_custom_call.1} parent=1 // loop_header_branch
      %133 = sbr.rel (%p131) target = $region28
    $region25: #{tpu_custom_call.1} parent=1 // loop_body
      %s141 = smul.u32 %s130, 4
      %s142 = sadd.s32 %s120, %s141
      %v143 = vsub.f32 %v138, %v135
      %v144 = vmul.f32 %v143, 0.33333334
      %v145 = vadd.f32 %v144, %v137
      %v146 = vsub.f32 %v140, %v136
      %v147 = vmul.f32 %v146, 0.33333334
      %v148 = vadd.f32 %v147, %v139
      %s149 = smul.u32 %s141, 4
      %s150 = smul.addr %s149, 8
      %s151 = scalar_lea.vmem [#allocation4], %s150
      %v152 = vld [vmem:[%s151] sm:$0xff]
      %v153 = vld [vmem:[%s151 + $0x8] sm:$0xff]
      %v154 = vld [vmem:[%s151 + $0x10] sm:$0xff]
      %v155 = vld [vmem:[%s151 + $0x18] sm:$0xff]
      %156 = vmatprep.subr.mxu0 %v57
      %157 = vmatpush1.msra.mxu0 %v56
      %158 = vmatprep.subr.mxu0 %v61
      %159 = vmatpush1.msra.mxu0 %v60
      %160 = vmatprep.subr.mxu0 %v65
      %161 = vmatpush1.msra.mxu0 %v64
      %162 = vmatprep.subr.mxu0 %v69
      %163 = vmatpush1.msra.mxu0 %v68
      %164 = vmatprep.subr.mxu0 %v73
      %165 = vmatpush1.msra.mxu0 %v72
      %166 = vmatprep.subr.mxu0 %v77
      %167 = vmatpush1.msra.mxu0 %v76
      %168 = vmatprep.subr.mxu0 %v81
      %169 = vmatpush1.msra.mxu0 %v80
      %170 = vmatprep.subr.mxu0 %v85
      %171 = vmatpush1.msra.mxu0 %v84
      %172 = vmatprep.subr.mxu0 %v89
      %173 = vmatpush1.msra.mxu0 %v88
      %174 = vmatprep.subr.mxu0 %v93
      %175 = vmatpush1.msra.mxu0 %v92
      %176 = vmatprep.subr.mxu0 %v97
      %177 = vmatpush1.msra.mxu0 %v96
      %178 = vmatprep.subr.mxu0 %v101
      %179 = vmatpush1.msra.mxu0 %v100
      %180 = vmatprep.subr.mxu0 %v105
      %181 = vmatpush1.msra.mxu0 %v104
      %182 = vmatprep.subr.mxu0 %v109
      %183 = vmatpush1.msra.mxu0 %v108
      %184 = vmatprep.subr.mxu0 %v113
      %185 = vmatpush1.msra.mxu0 %v112
      %186 = vmatprep.subr.mxu0 %v117
      %187 = vmatpush1.msra.mxu0 %v116
      %188 = vmatprep.subr.mxu0 0.0
      %189 = vmatpush1.msra.mxu0 0.0
      %190 = vmatprep.subr.mxu0 0.0
      %191 = vmatpush1.msra.mxu0 0.0
      %192 = vmatprep.subr.mxu0 0.0
      %193 = vmatpush1.msra.mxu0 0.0
      %194 = vmatprep.subr.mxu0 0.0
      %195 = vmatpush1.msra.mxu0 0.0
      %196 = vmatprep.subr.mxu0 0.0
      %197 = vmatpush1.msra.mxu0 0.0
      %198 = vmatprep.subr.mxu0 0.0
      %199 = vmatpush1.msra.mxu0 0.0
      %200 = vmatprep.subr.mxu0 0.0
      %201 = vmatpush1.msra.mxu0 0.0
      %202 = vmatprep.subr.mxu0 0.0
      %203 = vmatpush1.msra.mxu0 0.0
      %204 = vmatprep.subr.mxu0 0.0
      %205 = vmatpush1.msra.mxu0 0.0
      %206 = vmatprep.subr.mxu0 0.0
      %207 = vmatpush1.msra.mxu0 0.0
      %208 = vmatprep.subr.mxu0 0.0
      %209 = vmatpush1.msra.mxu0 0.0
      %210 = vmatprep.subr.mxu0 0.0
      %211 = vmatpush1.msra.mxu0 0.0
      %212 = vmatprep.subr.mxu0 0.0
      %213 = vmatpush1.msra.mxu0 0.0
      %214 = vmatprep.subr.mxu0 0.0
      %215 = vmatpush1.msra.mxu0 0.0
      %216 = vmatprep.subr.mxu0 0.0
      %217 = vmatpush1.msra.mxu0 0.0
      %218 = vmatprep.subr.mxu0 0.0
      %219 = vmatpush1.msra.mxu0 0.0
      %220 = vmatprep.mubr.f32.mxu0 0.0
      %221 = vmatmul.mubr.f32.gmra.mrb[0].mxu0 %v145
      %v222 = vpop.f32.mrb[0].mxu0
      %v223 = vadd.f32 0.0, %v222
      %v224 = vpop.f32.mrb[0].mxu0
      %v225 = vadd.f32 0.0, %v224
      %226 = vdwg.mxu0
      %227 = vmatprep.subr.mxu0 %v59
      %228 = vmatpush1.msra.mxu0 %v58
      %229 = vmatprep.subr.mxu0 %v63
      %230 = vmatpush1.msra.mxu0 %v62
      %231 = vmatprep.subr.mxu0 %v67
      %232 = vmatpush1.msra.mxu0 %v66
      %233 = vmatprep.subr.mxu0 %v71
      %234 = vmatpush1.msra.mxu0 %v70
      %235 = vmatprep.subr.mxu0 %v75
      %236 = vmatpush1.msra.mxu0 %v74
      %237 = vmatprep.subr.mxu0 %v79
      %238 = vmatpush1.msra.mxu0 %v78
      %239 = vmatprep.subr.mxu0 %v83
      %240 = vmatpush1.msra.mxu0 %v82
      %241 = vmatprep.subr.mxu0 %v87
      %242 = vmatpush1.msra.mxu0 %v86
      %243 = vmatprep.subr.mxu0 %v91
      %244 = vmatpush1.msra.mxu0 %v90
      %245 = vmatprep.subr.mxu0 %v95
      %246 = vmatpush1.msra.mxu0 %v94
      %247 = vmatprep.subr.mxu0 %v99
      %248 = vmatpush1.msra.mxu0 %v98
      %249 = vmatprep.subr.mxu0 %v103
      %250 = vmatpush1.msra.mxu0 %v102
      %251 = vmatprep.subr.mxu0 %v107
      %252 = vmatpush1.msra.mxu0 %v106
      %253 = vmatprep.subr.mxu0 %v111
      %254 = vmatpush1.msra.mxu0 %v110
      %255 = vmatprep.subr.mxu0 %v115
      %256 = vmatpush1.msra.mxu0 %v114
      %257 = vmatprep.subr.mxu0 %v119
      %258 = vmatpush1.msra.mxu0 %v118
      %259 = vmatprep.subr.mxu0 0.0
      %260 = vmatpush1.msra.mxu0 0.0
      %261 = vmatprep.subr.mxu0 0.0
      %262 = vmatpush1.msra.mxu0 0.0
      %263 = vmatprep.subr.mxu0 0.0
      %264 = vmatpush1.msra.mxu0 0.0
      %265 = vmatprep.subr.mxu0 0.0
      %266 = vmatpush1.msra.mxu0 0.0
      %267 = vmatprep.subr.mxu0 0.0
      %268 = vmatpush1.msra.mxu0 0.0
      %269 = vmatprep.subr.mxu0 0.0
      %270 = vmatpush1.msra.mxu0 0.0
      %271 = vmatprep.subr.mxu0 0.0
      %272 = vmatpush1.msra.mxu0 0.0
      %273 = vmatprep.subr.mxu0 0.0
      %274 = vmatpush1.msra.mxu0 0.0
      %275 = vmatprep.subr.mxu0 0.0
      %276 = vmatpush1.msra.mxu0 0.0
      %277 = vmatprep.subr.mxu0 0.0
      %278 = vmatpush1.msra.mxu0 0.0
      %279 = vmatprep.subr.mxu0 0.0
      %280 = vmatpush1.msra.mxu0 0.0
      %281 = vmatprep.subr.mxu0 0.0
      %282 = vmatpush1.msra.mxu0 0.0
      %283 = vmatprep.subr.mxu0 0.0
      %284 = vmatpush1.msra.mxu0 0.0
      %285 = vmatprep.subr.mxu0 0.0
      %286 = vmatpush1.msra.mxu0 0.0
      %287 = vmatprep.subr.mxu0 0.0
      %288 = vmatpush1.msra.mxu0 0.0
      %289 = vmatprep.subr.mxu0 0.0
      %290 = vmatpush1.msra.mxu0 0.0
      %291 = vmatprep.mubr.f32.mxu0 0.0
      %292 = vmatmul.mubr.f32.gmra.mrb[0].mxu0 %v145
      %v293 = vpop.f32.mrb[0].mxu0
      %v294 = vadd.f32 0.0, %v293
      %v295 = vpop.f32.mrb[0].mxu0
      %v296 = vadd.f32 0.0, %v295
      %297 = vdwg.mxu0
      %v298 = vadd.f32 %v152, %v223
      %v299 = vadd.f32 %v153, %v225
      %v300 = vadd.f32 %v154, %v294
      %v301 = vadd.f32 %v155, %v296
      %v302 = vmul.f32 %v298, 0.5
      %v303 = vtanh.pop %v302
      %v304 = vmul.f32 %v303, 0.5
      %v305 = vadd.f32 %v304, 0.5
      %v306 = vmul.f32 %v299, 0.5
      %v307 = vtanh.pop %v306
      %v308 = vmul.f32 %v307, 0.5
      %v309 = vadd.f32 %v308, 0.5
      %v310 = vtanh.pop %v300
      %v311 = vmul.f32 %v301, 0.5
      %v312 = vtanh.pop %v311
      %v313 = vmul.f32 %v312, 0.5
      %v314 = vadd.f32 %v313, 0.5
      %v315 = vmul.f32 %v309, %v148
      %v316 = vmul.f32 %v305, %v310
      %v317 = vadd.f32 %v315, %v316
      %v318 = vtanh.pop %v317
      %v319 = vmul.f32 %v314, %v318
      %s320 = smul.u32 %s141, 8
      %s321 = scalar_lea.vmem [#allocation9], %s320
      %322 = vst [vmem:[%s321] sm:$0xff] %v319
      %s323 = scalar_lea.vmem [#allocation10], %s320
      %324 = vst [vmem:[%s323] sm:$0xff] %v317
      %p325 = scmp.lt.s32.totalorder %s142, 22
      %s326 = scalar_select %p325, 1, 0
      %v327 = vstv %s326
      %vm328 = vcmp.eq.s32.totalorder %v327, 1
      %v329 = vsel %vm328, %v145, %v135
      %v330 = vsel %vm328, %v148, %v136
      %s331 = sadd.s32 %s142, 1
      %s332 = sadd.s32 %s141, 1
      %v333 = vsub.f32 %v319, %v329
      %v334 = vmul.f32 %v333, 0.33333334
      %v335 = vadd.f32 %v334, %v138
      %v336 = vsub.f32 %v317, %v330
      %v337 = vmul.f32 %v336, 0.33333334
      %v338 = vadd.f32 %v337, %v140
      %s339 = smul.u32 %s332, 4
      %s340 = smul.addr %s339, 8
      %s341 = scalar_lea.vmem [#allocation4], %s340
      %v342 = vld [vmem:[%s341] sm:$0xff]
      %v343 = vld [vmem:[%s341 + $0x8] sm:$0xff]
      %v344 = vld [vmem:[%s341 + $0x10] sm:$0xff]
      %v345 = vld [vmem:[%s341 + $0x18] sm:$0xff]
      %346 = vmatprep.subr.mxu0 %v57
      %347 = vmatpush1.msra.mxu0 %v56
      %348 = vmatprep.subr.mxu0 %v61
      %349 = vmatpush1.msra.mxu0 %v60
      %350 = vmatprep.subr.mxu0 %v65
      %351 = vmatpush1.msra.mxu0 %v64
      %352 = vmatprep.subr.mxu0 %v69
      %353 = vmatpush1.msra.mxu0 %v68
      %354 = vmatprep.subr.mxu0 %v73
      %355 = vmatpush1.msra.mxu0 %v72
      %356 = vmatprep.subr.mxu0 %v77
      %357 = vmatpush1.msra.mxu0 %v76
      %358 = vmatprep.subr.mxu0 %v81
      %359 = vmatpush1.msra.mxu0 %v80
      %360 = vmatprep.subr.mxu0 %v85
      %361 = vmatpush1.msra.mxu0 %v84
      %362 = vmatprep.subr.mxu0 %v89
      %363 = vmatpush1.msra.mxu0 %v88
      %364 = vmatprep.subr.mxu0 %v93
      %365 = vmatpush1.msra.mxu0 %v92
      %366 = vmatprep.subr.mxu0 %v97
      %367 = vmatpush1.msra.mxu0 %v96
      %368 = vmatprep.subr.mxu0 %v101
      %369 = vmatpush1.msra.mxu0 %v100
      %370 = vmatprep.subr.mxu0 %v105
      %371 = vmatpush1.msra.mxu0 %v104
      %372 = vmatprep.subr.mxu0 %v109
      %373 = vmatpush1.msra.mxu0 %v108
      %374 = vmatprep.subr.mxu0 %v113
      %375 = vmatpush1.msra.mxu0 %v112
      %376 = vmatprep.subr.mxu0 %v117
      %377 = vmatpush1.msra.mxu0 %v116
      %378 = vmatprep.subr.mxu0 0.0
      %379 = vmatpush1.msra.mxu0 0.0
      %380 = vmatprep.subr.mxu0 0.0
      %381 = vmatpush1.msra.mxu0 0.0
      %382 = vmatprep.subr.mxu0 0.0
      %383 = vmatpush1.msra.mxu0 0.0
      %384 = vmatprep.subr.mxu0 0.0
      %385 = vmatpush1.msra.mxu0 0.0
      %386 = vmatprep.subr.mxu0 0.0
      %387 = vmatpush1.msra.mxu0 0.0
      %388 = vmatprep.subr.mxu0 0.0
      %389 = vmatpush1.msra.mxu0 0.0
      %390 = vmatprep.subr.mxu0 0.0
      %391 = vmatpush1.msra.mxu0 0.0
      %392 = vmatprep.subr.mxu0 0.0
      %393 = vmatpush1.msra.mxu0 0.0
      %394 = vmatprep.subr.mxu0 0.0
      %395 = vmatpush1.msra.mxu0 0.0
      %396 = vmatprep.subr.mxu0 0.0
      %397 = vmatpush1.msra.mxu0 0.0
      %398 = vmatprep.subr.mxu0 0.0
      %399 = vmatpush1.msra.mxu0 0.0
      %400 = vmatprep.subr.mxu0 0.0
      %401 = vmatpush1.msra.mxu0 0.0
      %402 = vmatprep.subr.mxu0 0.0
      %403 = vmatpush1.msra.mxu0 0.0
      %404 = vmatprep.subr.mxu0 0.0
      %405 = vmatpush1.msra.mxu0 0.0
      %406 = vmatprep.subr.mxu0 0.0
      %407 = vmatpush1.msra.mxu0 0.0
      %408 = vmatprep.subr.mxu0 0.0
      %409 = vmatpush1.msra.mxu0 0.0
      %410 = vmatprep.mubr.f32.mxu0 0.0
      %411 = vmatmul.mubr.f32.gmra.mrb[0].mxu0 %v335
      %v412 = vpop.f32.mrb[0].mxu0
      %v413 = vadd.f32 0.0, %v412
      %v414 = vpop.f32.mrb[0].mxu0
      %v415 = vadd.f32 0.0, %v414
      %416 = vdwg.mxu0
      %417 = vmatprep.subr.mxu0 %v59
      %418 = vmatpush1.msra.mxu0 %v58
      %419 = vmatprep.subr.mxu0 %v63
      %420 = vmatpush1.msra.mxu0 %v62
      %421 = vmatprep.subr.mxu0 %v67
      %422 = vmatpush1.msra.mxu0 %v66
      %423 = vmatprep.subr.mxu0 %v71
      %424 = vmatpush1.msra.mxu0 %v70
      %425 = vmatprep.subr.mxu0 %v75
      %426 = vmatpush1.msra.mxu0 %v74
      %427 = vmatprep.subr.mxu0 %v79
      %428 = vmatpush1.msra.mxu0 %v78
      %429 = vmatprep.subr.mxu0 %v83
      %430 = vmatpush1.msra.mxu0 %v82
      %431 = vmatprep.subr.mxu0 %v87
      %432 = vmatpush1.msra.mxu0 %v86
      %433 = vmatprep.subr.mxu0 %v91
      %434 = vmatpush1.msra.mxu0 %v90
      %435 = vmatprep.subr.mxu0 %v95
      %436 = vmatpush1.msra.mxu0 %v94
      %437 = vmatprep.subr.mxu0 %v99
      %438 = vmatpush1.msra.mxu0 %v98
      %439 = vmatprep.subr.mxu0 %v103
      %440 = vmatpush1.msra.mxu0 %v102
      %441 = vmatprep.subr.mxu0 %v107
      %442 = vmatpush1.msra.mxu0 %v106
      %443 = vmatprep.subr.mxu0 %v111
      %444 = vmatpush1.msra.mxu0 %v110
      %445 = vmatprep.subr.mxu0 %v115
      %446 = vmatpush1.msra.mxu0 %v114
      %447 = vmatprep.subr.mxu0 %v119
      %448 = vmatpush1.msra.mxu0 %v118
      %449 = vmatprep.subr.mxu0 0.0
      %450 = vmatpush1.msra.mxu0 0.0
      %451 = vmatprep.subr.mxu0 0.0
      %452 = vmatpush1.msra.mxu0 0.0
      %453 = vmatprep.subr.mxu0 0.0
      %454 = vmatpush1.msra.mxu0 0.0
      %455 = vmatprep.subr.mxu0 0.0
      %456 = vmatpush1.msra.mxu0 0.0
      %457 = vmatprep.subr.mxu0 0.0
      %458 = vmatpush1.msra.mxu0 0.0
      %459 = vmatprep.subr.mxu0 0.0
      %460 = vmatpush1.msra.mxu0 0.0
      %461 = vmatprep.subr.mxu0 0.0
      %462 = vmatpush1.msra.mxu0 0.0
      %463 = vmatprep.subr.mxu0 0.0
      %464 = vmatpush1.msra.mxu0 0.0
      %465 = vmatprep.subr.mxu0 0.0
      %466 = vmatpush1.msra.mxu0 0.0
      %467 = vmatprep.subr.mxu0 0.0
      %468 = vmatpush1.msra.mxu0 0.0
      %469 = vmatprep.subr.mxu0 0.0
      %470 = vmatpush1.msra.mxu0 0.0
      %471 = vmatprep.subr.mxu0 0.0
      %472 = vmatpush1.msra.mxu0 0.0
      %473 = vmatprep.subr.mxu0 0.0
      %474 = vmatpush1.msra.mxu0 0.0
      %475 = vmatprep.subr.mxu0 0.0
      %476 = vmatpush1.msra.mxu0 0.0
      %477 = vmatprep.subr.mxu0 0.0
      %478 = vmatpush1.msra.mxu0 0.0
      %479 = vmatprep.subr.mxu0 0.0
      %480 = vmatpush1.msra.mxu0 0.0
      %481 = vmatprep.mubr.f32.mxu0 0.0
      %482 = vmatmul.mubr.f32.gmra.mrb[0].mxu0 %v335
      %v483 = vpop.f32.mrb[0].mxu0
      %v484 = vadd.f32 0.0, %v483
      %v485 = vpop.f32.mrb[0].mxu0
      %v486 = vadd.f32 0.0, %v485
      %487 = vdwg.mxu0
      %v488 = vadd.f32 %v342, %v413
      %v489 = vadd.f32 %v343, %v415
      %v490 = vadd.f32 %v344, %v484
      %v491 = vadd.f32 %v345, %v486
      %v492 = vmul.f32 %v488, 0.5
      %v493 = vtanh.pop %v492
      %v494 = vmul.f32 %v493, 0.5
      %v495 = vadd.f32 %v494, 0.5
      %v496 = vmul.f32 %v489, 0.5
      %v497 = vtanh.pop %v496
      %v498 = vmul.f32 %v497, 0.5
      %v499 = vadd.f32 %v498, 0.5
      %v500 = vtanh.pop %v490
      %v501 = vmul.f32 %v491, 0.5
      %v502 = vtanh.pop %v501
      %v503 = vmul.f32 %v502, 0.5
      %v504 = vadd.f32 %v503, 0.5
      %v505 = vmul.f32 %v499, %v338
      %v506 = vmul.f32 %v495, %v500
      %v507 = vadd.f32 %v505, %v506
      %v508 = vtanh.pop %v507
      %v509 = vmul.f32 %v504, %v508
      %s510 = smul.u32 %s332, 8
      %s511 = scalar_lea.vmem [#allocation9], %s510
      %512 = vst [vmem:[%s511] sm:$0xff] %v509
      %s513 = scalar_lea.vmem [#allocation10], %s510
      %514 = vst [vmem:[%s513] sm:$0xff] %v507
      %p515 = scmp.lt.s32.totalorder %s331, 22
      %s516 = scalar_select %p515, 1, 0
      %v517 = vstv %s516
      %vm518 = vcmp.eq.s32.totalorder %v517, 1
      %v519 = vsel %vm518, %v335, %v329
      %v520 = vsel %vm518, %v338, %v330
      %s521 = sadd.s32 %s142, 2
      %s522 = sadd.s32 %s141, 2
      %v523 = vsub.f32 %v509, %v519
      %v524 = vmul.f32 %v523, 0.33333334
      %v525 = vadd.f32 %v524, %v319
      %v526 = vsub.f32 %v507, %v520
      %v527 = vmul.f32 %v526, 0.33333334
      %v528 = vadd.f32 %v527, %v317
      %s529 = smul.u32 %s522, 4
      %s530 = smul.addr %s529, 8
      %s531 = scalar_lea.vmem [#allocation4], %s530
      %v532 = vld [vmem:[%s531] sm:$0xff]
      %v533 = vld [vmem:[%s531 + $0x8] sm:$0xff]
      %v534 = vld [vmem:[%s531 + $0x10] sm:$0xff]
      %v535 = vld [vmem:[%s531 + $0x18] sm:$0xff]
      %536 = vmatprep.subr.mxu0 %v57
      %537 = vmatpush1.msra.mxu0 %v56
      %538 = vmatprep.subr.mxu0 %v61
      %539 = vmatpush1.msra.mxu0 %v60
      %540 = vmatprep.subr.mxu0 %v65
      %541 = vmatpush1.msra.mxu0 %v64
      %542 = vmatprep.subr.mxu0 %v69
      %543 = vmatpush1.msra.mxu0 %v68
      %544 = vmatprep.subr.mxu0 %v73
      %545 = vmatpush1.msra.mxu0 %v72
      %546 = vmatprep.subr.mxu0 %v77
      %547 = vmatpush1.msra.mxu0 %v76
      %548 = vmatprep.subr.mxu0 %v81
      %549 = vmatpush1.msra.mxu0 %v80
      %550 = vmatprep.subr.mxu0 %v85
      %551 = vmatpush1.msra.mxu0 %v84
      %552 = vmatprep.subr.mxu0 %v89
      %553 = vmatpush1.msra.mxu0 %v88
      %554 = vmatprep.subr.mxu0 %v93
      %555 = vmatpush1.msra.mxu0 %v92
      %556 = vmatprep.subr.mxu0 %v97
      %557 = vmatpush1.msra.mxu0 %v96
      %558 = vmatprep.subr.mxu0 %v101
      %559 = vmatpush1.msra.mxu0 %v100
      %560 = vmatprep.subr.mxu0 %v105
      %561 = vmatpush1.msra.mxu0 %v104
      %562 = vmatprep.subr.mxu0 %v109
      %563 = vmatpush1.msra.mxu0 %v108
      %564 = vmatprep.subr.mxu0 %v113
      %565 = vmatpush1.msra.mxu0 %v112
      %566 = vmatprep.subr.mxu0 %v117
      %567 = vmatpush1.msra.mxu0 %v116
      %568 = vmatprep.subr.mxu0 0.0
      %569 = vmatpush1.msra.mxu0 0.0
      %570 = vmatprep.subr.mxu0 0.0
      %571 = vmatpush1.msra.mxu0 0.0
      %572 = vmatprep.subr.mxu0 0.0
      %573 = vmatpush1.msra.mxu0 0.0
      %574 = vmatprep.subr.mxu0 0.0
      %575 = vmatpush1.msra.mxu0 0.0
      %576 = vmatprep.subr.mxu0 0.0
      %577 = vmatpush1.msra.mxu0 0.0
      %578 = vmatprep.subr.mxu0 0.0
      %579 = vmatpush1.msra.mxu0 0.0
      %580 = vmatprep.subr.mxu0 0.0
      %581 = vmatpush1.msra.mxu0 0.0
      %582 = vmatprep.subr.mxu0 0.0
      %583 = vmatpush1.msra.mxu0 0.0
      %584 = vmatprep.subr.mxu0 0.0
      %585 = vmatpush1.msra.mxu0 0.0
      %586 = vmatprep.subr.mxu0 0.0
      %587 = vmatpush1.msra.mxu0 0.0
      %588 = vmatprep.subr.mxu0 0.0
      %589 = vmatpush1.msra.mxu0 0.0
      %590 = vmatprep.subr.mxu0 0.0
      %591 = vmatpush1.msra.mxu0 0.0
      %592 = vmatprep.subr.mxu0 0.0
      %593 = vmatpush1.msra.mxu0 0.0
      %594 = vmatprep.subr.mxu0 0.0
      %595 = vmatpush1.msra.mxu0 0.0
      %596 = vmatprep.subr.mxu0 0.0
      %597 = vmatpush1.msra.mxu0 0.0
      %598 = vmatprep.subr.mxu0 0.0
      %599 = vmatpush1.msra.mxu0 0.0
      %600 = vmatprep.mubr.f32.mxu0 0.0
      %601 = vmatmul.mubr.f32.gmra.mrb[0].mxu0 %v525
      %v602 = vpop.f32.mrb[0].mxu0
      %v603 = vadd.f32 0.0, %v602
      %v604 = vpop.f32.mrb[0].mxu0
      %v605 = vadd.f32 0.0, %v604
      %606 = vdwg.mxu0
      %607 = vmatprep.subr.mxu0 %v59
      %608 = vmatpush1.msra.mxu0 %v58
      %609 = vmatprep.subr.mxu0 %v63
      %610 = vmatpush1.msra.mxu0 %v62
      %611 = vmatprep.subr.mxu0 %v67
      %612 = vmatpush1.msra.mxu0 %v66
      %613 = vmatprep.subr.mxu0 %v71
      %614 = vmatpush1.msra.mxu0 %v70
      %615 = vmatprep.subr.mxu0 %v75
      %616 = vmatpush1.msra.mxu0 %v74
      %617 = vmatprep.subr.mxu0 %v79
      %618 = vmatpush1.msra.mxu0 %v78
      %619 = vmatprep.subr.mxu0 %v83
      %620 = vmatpush1.msra.mxu0 %v82
      %621 = vmatprep.subr.mxu0 %v87
      %622 = vmatpush1.msra.mxu0 %v86
      %623 = vmatprep.subr.mxu0 %v91
      %624 = vmatpush1.msra.mxu0 %v90
      %625 = vmatprep.subr.mxu0 %v95
      %626 = vmatpush1.msra.mxu0 %v94
      %627 = vmatprep.subr.mxu0 %v99
      %628 = vmatpush1.msra.mxu0 %v98
      %629 = vmatprep.subr.mxu0 %v103
      %630 = vmatpush1.msra.mxu0 %v102
      %631 = vmatprep.subr.mxu0 %v107
      %632 = vmatpush1.msra.mxu0 %v106
      %633 = vmatprep.subr.mxu0 %v111
      %634 = vmatpush1.msra.mxu0 %v110
      %635 = vmatprep.subr.mxu0 %v115
      %636 = vmatpush1.msra.mxu0 %v114
      %637 = vmatprep.subr.mxu0 %v119
      %638 = vmatpush1.msra.mxu0 %v118
      %639 = vmatprep.subr.mxu0 0.0
      %640 = vmatpush1.msra.mxu0 0.0
      %641 = vmatprep.subr.mxu0 0.0
      %642 = vmatpush1.msra.mxu0 0.0
      %643 = vmatprep.subr.mxu0 0.0
      %644 = vmatpush1.msra.mxu0 0.0
      %645 = vmatprep.subr.mxu0 0.0
      %646 = vmatpush1.msra.mxu0 0.0
      %647 = vmatprep.subr.mxu0 0.0
      %648 = vmatpush1.msra.mxu0 0.0
      %649 = vmatprep.subr.mxu0 0.0
      %650 = vmatpush1.msra.mxu0 0.0
      %651 = vmatprep.subr.mxu0 0.0
      %652 = vmatpush1.msra.mxu0 0.0
      %653 = vmatprep.subr.mxu0 0.0
      %654 = vmatpush1.msra.mxu0 0.0
      %655 = vmatprep.subr.mxu0 0.0
      %656 = vmatpush1.msra.mxu0 0.0
      %657 = vmatprep.subr.mxu0 0.0
      %658 = vmatpush1.msra.mxu0 0.0
      %659 = vmatprep.subr.mxu0 0.0
      %660 = vmatpush1.msra.mxu0 0.0
      %661 = vmatprep.subr.mxu0 0.0
      %662 = vmatpush1.msra.mxu0 0.0
      %663 = vmatprep.subr.mxu0 0.0
      %664 = vmatpush1.msra.mxu0 0.0
      %665 = vmatprep.subr.mxu0 0.0
      %666 = vmatpush1.msra.mxu0 0.0
      %667 = vmatprep.subr.mxu0 0.0
      %668 = vmatpush1.msra.mxu0 0.0
      %669 = vmatprep.subr.mxu0 0.0
      %670 = vmatpush1.msra.mxu0 0.0
      %671 = vmatprep.mubr.f32.mxu0 0.0
      %672 = vmatmul.mubr.f32.gmra.mrb[0].mxu0 %v525
      %v673 = vpop.f32.mrb[0].mxu0
      %v674 = vadd.f32 0.0, %v673
      %v675 = vpop.f32.mrb[0].mxu0
      %v676 = vadd.f32 0.0, %v675
      %677 = vdwg.mxu0
      %v678 = vadd.f32 %v532, %v603
      %v679 = vadd.f32 %v533, %v605
      %v680 = vadd.f32 %v534, %v674
      %v681 = vadd.f32 %v535, %v676
      %v682 = vmul.f32 %v678, 0.5
      %v683 = vtanh.pop %v682
      %v684 = vmul.f32 %v683, 0.5
      %v685 = vadd.f32 %v684, 0.5
      %v686 = vmul.f32 %v679, 0.5
      %v687 = vtanh.pop %v686
      %v688 = vmul.f32 %v687, 0.5
      %v689 = vadd.f32 %v688, 0.5
      %v690 = vtanh.pop %v680
      %v691 = vmul.f32 %v681, 0.5
      %v692 = vtanh.pop %v691
      %v693 = vmul.f32 %v692, 0.5
      %v694 = vadd.f32 %v693, 0.5
      %v695 = vmul.f32 %v689, %v528
      %v696 = vmul.f32 %v685, %v690
      %v697 = vadd.f32 %v695, %v696
      %v698 = vtanh.pop %v697
      %v699 = vmul.f32 %v694, %v698
      %s700 = smul.u32 %s522, 8
      %s701 = scalar_lea.vmem [#allocation9], %s700
      %702 = vst [vmem:[%s701] sm:$0xff] %v699
      %s703 = scalar_lea.vmem [#allocation10], %s700
      %704 = vst [vmem:[%s703] sm:$0xff] %v697
      %p705 = scmp.lt.s32.totalorder %s521, 22
      %s706 = scalar_select %p705, 1, 0
      %v707 = vstv %s706
      %vm708 = vcmp.eq.s32.totalorder %v707, 1
      %v709 = vsel %vm708, %v525, %v519
      %v710 = vsel %vm708, %v528, %v520
      %s711 = sadd.s32 %s142, 3
      %s712 = sadd.s32 %s141, 3
      %v713 = vsub.f32 %v699, %v709
      %v714 = vmul.f32 %v713, 0.33333334
      %v715 = vadd.f32 %v714, %v509
      %v716 = vsub.f32 %v697, %v710
      %v717 = vmul.f32 %v716, 0.33333334
      %v718 = vadd.f32 %v717, %v507
      %s719 = smul.u32 %s712, 4
      %s720 = smul.addr %s719, 8
      %s721 = scalar_lea.vmem [#allocation4], %s720
      %v722 = vld [vmem:[%s721] sm:$0xff]
      %v723 = vld [vmem:[%s721 + $0x8] sm:$0xff]
      %v724 = vld [vmem:[%s721 + $0x10] sm:$0xff]
      %v725 = vld [vmem:[%s721 + $0x18] sm:$0xff]
      %726 = vmatprep.subr.mxu0 %v57
      %727 = vmatpush1.msra.mxu0 %v56
      %728 = vmatprep.subr.mxu0 %v61
      %729 = vmatpush1.msra.mxu0 %v60
      %730 = vmatprep.subr.mxu0 %v65
      %731 = vmatpush1.msra.mxu0 %v64
      %732 = vmatprep.subr.mxu0 %v69
      %733 = vmatpush1.msra.mxu0 %v68
      %734 = vmatprep.subr.mxu0 %v73
      %735 = vmatpush1.msra.mxu0 %v72
      %736 = vmatprep.subr.mxu0 %v77
      %737 = vmatpush1.msra.mxu0 %v76
      %738 = vmatprep.subr.mxu0 %v81
      %739 = vmatpush1.msra.mxu0 %v80
      %740 = vmatprep.subr.mxu0 %v85
      %741 = vmatpush1.msra.mxu0 %v84
      %742 = vmatprep.subr.mxu0 %v89
      %743 = vmatpush1.msra.mxu0 %v88
      %744 = vmatprep.subr.mxu0 %v93
      %745 = vmatpush1.msra.mxu0 %v92
      %746 = vmatprep.subr.mxu0 %v97
      %747 = vmatpush1.msra.mxu0 %v96
      %748 = vmatprep.subr.mxu0 %v101
      %749 = vmatpush1.msra.mxu0 %v100
      %750 = vmatprep.subr.mxu0 %v105
      %751 = vmatpush1.msra.mxu0 %v104
      %752 = vmatprep.subr.mxu0 %v109
      %753 = vmatpush1.msra.mxu0 %v108
      %754 = vmatprep.subr.mxu0 %v113
      %755 = vmatpush1.msra.mxu0 %v112
      %756 = vmatprep.subr.mxu0 %v117
      %757 = vmatpush1.msra.mxu0 %v116
      %758 = vmatprep.subr.mxu0 0.0
      %759 = vmatpush1.msra.mxu0 0.0
      %760 = vmatprep.subr.mxu0 0.0
      %761 = vmatpush1.msra.mxu0 0.0
      %762 = vmatprep.subr.mxu0 0.0
      %763 = vmatpush1.msra.mxu0 0.0
      %764 = vmatprep.subr.mxu0 0.0
      %765 = vmatpush1.msra.mxu0 0.0
      %766 = vmatprep.subr.mxu0 0.0
      %767 = vmatpush1.msra.mxu0 0.0
      %768 = vmatprep.subr.mxu0 0.0
      %769 = vmatpush1.msra.mxu0 0.0
      %770 = vmatprep.subr.mxu0 0.0
      %771 = vmatpush1.msra.mxu0 0.0
      %772 = vmatprep.subr.mxu0 0.0
      %773 = vmatpush1.msra.mxu0 0.0
      %774 = vmatprep.subr.mxu0 0.0
      %775 = vmatpush1.msra.mxu0 0.0
      %776 = vmatprep.subr.mxu0 0.0
      %777 = vmatpush1.msra.mxu0 0.0
      %778 = vmatprep.subr.mxu0 0.0
      %779 = vmatpush1.msra.mxu0 0.0
      %780 = vmatprep.subr.mxu0 0.0
      %781 = vmatpush1.msra.mxu0 0.0
      %782 = vmatprep.subr.mxu0 0.0
      %783 = vmatpush1.msra.mxu0 0.0
      %784 = vmatprep.subr.mxu0 0.0
      %785 = vmatpush1.msra.mxu0 0.0
      %786 = vmatprep.subr.mxu0 0.0
      %787 = vmatpush1.msra.mxu0 0.0
      %788 = vmatprep.subr.mxu0 0.0
      %789 = vmatpush1.msra.mxu0 0.0
      %790 = vmatprep.mubr.f32.mxu0 0.0
      %791 = vmatmul.mubr.f32.gmra.mrb[0].mxu0 %v715
      %v792 = vpop.f32.mrb[0].mxu0
      %v793 = vadd.f32 0.0, %v792
      %v794 = vpop.f32.mrb[0].mxu0
      %v795 = vadd.f32 0.0, %v794
      %796 = vdwg.mxu0
      %797 = vmatprep.subr.mxu0 %v59
      %798 = vmatpush1.msra.mxu0 %v58
      %799 = vmatprep.subr.mxu0 %v63
      %800 = vmatpush1.msra.mxu0 %v62
      %801 = vmatprep.subr.mxu0 %v67
      %802 = vmatpush1.msra.mxu0 %v66
      %803 = vmatprep.subr.mxu0 %v71
      %804 = vmatpush1.msra.mxu0 %v70
      %805 = vmatprep.subr.mxu0 %v75
      %806 = vmatpush1.msra.mxu0 %v74
      %807 = vmatprep.subr.mxu0 %v79
      %808 = vmatpush1.msra.mxu0 %v78
      %809 = vmatprep.subr.mxu0 %v83
      %810 = vmatpush1.msra.mxu0 %v82
      %811 = vmatprep.subr.mxu0 %v87
      %812 = vmatpush1.msra.mxu0 %v86
      %813 = vmatprep.subr.mxu0 %v91
      %814 = vmatpush1.msra.mxu0 %v90
      %815 = vmatprep.subr.mxu0 %v95
      %816 = vmatpush1.msra.mxu0 %v94
      %817 = vmatprep.subr.mxu0 %v99
      %818 = vmatpush1.msra.mxu0 %v98
      %819 = vmatprep.subr.mxu0 %v103
      %820 = vmatpush1.msra.mxu0 %v102
      %821 = vmatprep.subr.mxu0 %v107
      %822 = vmatpush1.msra.mxu0 %v106
      %823 = vmatprep.subr.mxu0 %v111
      %824 = vmatpush1.msra.mxu0 %v110
      %825 = vmatprep.subr.mxu0 %v115
      %826 = vmatpush1.msra.mxu0 %v114
      %827 = vmatprep.subr.mxu0 %v119
      %828 = vmatpush1.msra.mxu0 %v118
      %829 = vmatprep.subr.mxu0 0.0
      %830 = vmatpush1.msra.mxu0 0.0
      %831 = vmatprep.subr.mxu0 0.0
      %832 = vmatpush1.msra.mxu0 0.0
      %833 = vmatprep.subr.mxu0 0.0
      %834 = vmatpush1.msra.mxu0 0.0
      %835 = vmatprep.subr.mxu0 0.0
      %836 = vmatpush1.msra.mxu0 0.0
      %837 = vmatprep.subr.mxu0 0.0
      %838 = vmatpush1.msra.mxu0 0.0
      %839 = vmatprep.subr.mxu0 0.0
      %840 = vmatpush1.msra.mxu0 0.0
      %841 = vmatprep.subr.mxu0 0.0
      %842 = vmatpush1.msra.mxu0 0.0
      %843 = vmatprep.subr.mxu0 0.0
      %844 = vmatpush1.msra.mxu0 0.0
      %845 = vmatprep.subr.mxu0 0.0
      %846 = vmatpush1.msra.mxu0 0.0
      %847 = vmatprep.subr.mxu0 0.0
      %848 = vmatpush1.msra.mxu0 0.0
      %849 = vmatprep.subr.mxu0 0.0
      %850 = vmatpush1.msra.mxu0 0.0
      %851 = vmatprep.subr.mxu0 0.0
      %852 = vmatpush1.msra.mxu0 0.0
      %853 = vmatprep.subr.mxu0 0.0
      %854 = vmatpush1.msra.mxu0 0.0
      %855 = vmatprep.subr.mxu0 0.0
      %856 = vmatpush1.msra.mxu0 0.0
      %857 = vmatprep.subr.mxu0 0.0
      %858 = vmatpush1.msra.mxu0 0.0
      %859 = vmatprep.subr.mxu0 0.0
      %860 = vmatpush1.msra.mxu0 0.0
      %861 = vmatprep.mubr.f32.mxu0 0.0
      %862 = vmatmul.mubr.f32.gmra.mrb[0].mxu0 %v715
      %v863 = vpop.f32.mrb[0].mxu0
      %v864 = vadd.f32 0.0, %v863
      %v865 = vpop.f32.mrb[0].mxu0
      %v866 = vadd.f32 0.0, %v865
      %867 = vdwg.mxu0
      %v868 = vadd.f32 %v722, %v793
      %v869 = vadd.f32 %v723, %v795
      %v870 = vadd.f32 %v724, %v864
      %v871 = vadd.f32 %v725, %v866
      %v872 = vmul.f32 %v868, 0.5
      %v873 = vtanh.pop %v872
      %v874 = vmul.f32 %v873, 0.5
      %v875 = vadd.f32 %v874, 0.5
      %v876 = vmul.f32 %v869, 0.5
      %v877 = vtanh.pop %v876
      %v878 = vmul.f32 %v877, 0.5
      %v879 = vadd.f32 %v878, 0.5
      %v880 = vtanh.pop %v870
      %v881 = vmul.f32 %v871, 0.5
      %v882 = vtanh.pop %v881
      %v883 = vmul.f32 %v882, 0.5
      %v884 = vadd.f32 %v883, 0.5
      %v885 = vmul.f32 %v879, %v718
      %v886 = vmul.f32 %v875, %v880
      %v887 = vadd.f32 %v885, %v886
      %v888 = vtanh.pop %v887
      %v889 = vmul.f32 %v884, %v888
      %s890 = smul.u32 %s712, 8
      %s891 = scalar_lea.vmem [#allocation9], %s890
      %892 = vst [vmem:[%s891] sm:$0xff] %v889
      %s893 = scalar_lea.vmem [#allocation10], %s890
      %894 = vst [vmem:[%s893] sm:$0xff] %v887
      %p895 = scmp.lt.s32.totalorder %s711, 22
      %s896 = scalar_select %p895, 1, 0
      %v897 = vstv %s896
      %vm898 = vcmp.eq.s32.totalorder %v897, 1
      %v899 = vsel %vm898, %v715, %v709
      %v900 = vsel %vm898, %v718, %v710
    $region26: #{tpu_custom_call.1} parent=1 // loop_footer
      %s134 = sadd.s32 1, %s130
    $region27: #{tpu_custom_call.1} parent=1 // loop_footer_branch
      %129 = sbr.rel target = $region23
    $region28: #{tpu_custom_call.1} parent=1 // loop_exit
      _
    %901 = vst [vmem:[#allocation12] sm:$0xff] %v135
    %902 = vst [vmem:[#allocation13] sm:$0xff] %v136
    %903 = vst [vmem:[#allocation2] sm:$0xff] %v137
    %904 = vst [vmem:[#allocation3] sm:$0xff] %v139
    %905 = vst [vmem:[%s122] sm:$0xff] %v138
    %906 = vst [vmem:[%s125] sm:$0xff] %v140
    // Predicated region
    $region29: #{tpu_custom_call.1} parent=1 // pred_check
      _
    $region30: #{tpu_custom_call.1} parent=1 // pred_check_branch
      %908 = sbr.rel (0) target = $region32
    $region31: #{tpu_custom_call.1} parent=1 // pred_region
      %s910 = ssub.s32 3072, 3072
      %911 = vsyncadd [#allocation6], %s910
      %s912 = sshll.u32 [#allocation9], 4
      %s913 = int_to_ptr.vmem [resolvable:$true] %s912
      %918 = dma.vmem_to_hbm [thread:$0]  %s913, 3072, %s2, [#allocation6], 128, 128, 8
    $region32: #{tpu_custom_call.1} parent=1 // pred_fallthru
      _
    // Predicated region
    $region33: #{tpu_custom_call.1} parent=1 // pred_check
      _
    $region34: #{tpu_custom_call.1} parent=1 // pred_check_branch
      %920 = sbr.rel (0) target = $region36
    $region35: #{tpu_custom_call.1} parent=1 // pred_region
      %s922 = ssub.s32 3072, 3072
      %923 = vsyncadd [#allocation11], %s922
      %s924 = sshll.u32 [#allocation10], 4
      %s925 = int_to_ptr.vmem [resolvable:$true] %s924
      %930 = dma.vmem_to_hbm [thread:$0]  %s925, 3072, %s3, [#allocation11], 128, 128, 8
    $region36: #{tpu_custom_call.1} parent=1 // pred_fallthru
      _
    // Predicated region
    $region37: #{tpu_custom_call.1} parent=1 // pred_check
      _
    $region38: #{tpu_custom_call.1} parent=1 // pred_check_branch
      %932 = sbr.rel (0) target = $region40
    $region39: #{tpu_custom_call.1} parent=1 // pred_region
      %s934 = ssub.s32 128, 128
      %935 = vsyncadd [#allocation11], %s934
      %s937 = sshll.u32 [#allocation12], 4
      %s938 = int_to_ptr.vmem [resolvable:$true] %s937
      %940 = dma.vmem_to_hbm [thread:$0]  %s938, 128, %s4, [#allocation11]
    $region40: #{tpu_custom_call.1} parent=1 // pred_fallthru
      _
    // Predicated region
    $region41: #{tpu_custom_call.1} parent=1 // pred_check
      _
    $region42: #{tpu_custom_call.1} parent=1 // pred_check_branch
      %942 = sbr.rel (0) target = $region44
    $region43: #{tpu_custom_call.1} parent=1 // pred_region
      %s944 = ssub.s32 128, 128
      %945 = vsyncadd [#allocation14], %s944
      %s947 = sshll.u32 [#allocation13], 4
      %s948 = int_to_ptr.vmem [resolvable:$true] %s947
      %950 = dma.vmem_to_hbm [thread:$0]  %s948, 128, %s5, [#allocation14]
    $region44: #{tpu_custom_call.1} parent=1 // pred_fallthru
      _
    // Predicated region
    $region45: #{tpu_custom_call.1} parent=1 // pred_check
      _
    $region46: #{tpu_custom_call.1} parent=1 // pred_check_branch
      %952 = sbr.rel (0) target = $region48
    $region47: #{tpu_custom_call.1} parent=1 // pred_region
      %953 = dma.done [#allocation6], 3072
    $region48: #{tpu_custom_call.1} parent=1 // pred_fallthru
      _
    // Predicated region
    $region49: #{tpu_custom_call.1} parent=1 // pred_check
      _
    $region50: #{tpu_custom_call.1} parent=1 // pred_check_branch
      %955 = sbr.rel (0) target = $region52
    $region51: #{tpu_custom_call.1} parent=1 // pred_region
      %956 = dma.done [#allocation11], 3072
    $region52: #{tpu_custom_call.1} parent=1 // pred_fallthru
      _
    // Predicated region
    $region53: #{tpu_custom_call.1} parent=1 // pred_check
      _
    $region54: #{tpu_custom_call.1} parent=1 // pred_check_branch
      %958 = sbr.rel (0) target = $region56
    $region55: #{tpu_custom_call.1} parent=1 // pred_region
      %959 = dma.done [#allocation11], 128
    $region56: #{tpu_custom_call.1} parent=1 // pred_fallthru
      _
    // Predicated region
    $region57: #{tpu_custom_call.1} parent=1 // pred_check
      _
    $region58: #{tpu_custom_call.1} parent=1 // pred_check_branch
      %961 = sbr.rel (0) target = $region60
    $region59: #{tpu_custom_call.1} parent=1 // pred_region
      %962 = dma.done [#allocation14], 128
    $region60: #{tpu_custom_call.1} parent=1 // pred_fallthru
      _
    %963 = vsyncpa [#allocation5], 1
    %964 = vsyncpa [#allocation8], 1
    %965 = vsyncpa [#allocation6], 1
    %966 = vsyncpa [#allocation11], 1
    %967 = vsyncpa [#allocation14], 1

</llo_original>
